<compile_context>
chip_gen: v6e
topology: v6e:2x2x1
jax: 0.10.0
libtpu: 0.0.40
codegen_flags: <defaults>
</compile_context>

<pallas_src>
import jax
import jax.numpy as jnp
from jax.experimental import pallas as pl
from jax.experimental.pallas import tpu as pltpu

EPS = 1e-5
LANE = 128


def _conv_weight_banded(w_oihw, w_in, w_out, stride, pad, lane_in):
    """PyTorch Conv2d weight (Cout, Cin, KH, KW) -> banded matmul weight (bf16).

    Maps a lane-packed UNPADDED input row (width w_in, channels Cin, lane-padded to
    lane_in) of each of the KH kernel rows to a lane-packed output row (w_out*Cout).
    W-direction zero padding is baked in: taps that would read outside [0, w_in)
    simply have no weight entry.
      row index: i*lane_in + x_in*Cin + ci ; col index: x_o*Cout + co
      entry w[co,ci,i,j]  iff  x_in == stride*x_o + j - pad
    """
    cout, cin, kh, kw = w_oihw.shape
    w = jnp.transpose(w_oihw, (2, 3, 1, 0)).astype(jnp.float32)      # (KH, KW, Cin, Cout)
    xi = jnp.arange(w_in)[None, :, None]
    xo = jnp.arange(w_out)[None, None, :]
    j = jnp.arange(kw)[:, None, None]
    sel = (xi == stride * xo + j - pad).astype(jnp.float32)          # (KW, Win, Wo)
    big = jnp.einsum('jpx,ijco->ipcxo', sel, w)                      # (KH, Win, Cin, Wo, Cout)
    big = big.reshape(kh, w_in * cin, w_out * cout)
    big = jnp.pad(big, ((0, 0), (0, lane_in - w_in * cin), (0, 0)))
    return big.reshape(kh * lane_in, w_out * cout).astype(jnp.bfloat16)


def prepare_block_params(params, h, w):
    """One-time parameter banding / packing (hoisted out of the per-call path)."""
    cout, cin = params["w1"].shape[0], params["w1"].shape[1]
    wo = w // 2
    # Structural assumptions of the lane-dense packing -- fail loudly otherwise.
    assert w * cout == LANE, "packing assumes W*Cout == 128"
    assert w * cin <= LANE, "packing assumes W*Cin <= 128"
    assert h % 2 == 0 and w % 2 == 0
    l1 = LANE                                                        # lanes of packed input
    l2 = w * cout                                                    # lanes of conv1/2 output (=128)

    w1b = _conv_weight_banded(params["w1"], w, w, 1, 1, l1)          # (3*128, 128)
    w2b = _conv_weight_banded(params["w2"], w, w, 1, 1, l2)          # (3*128, 128)
    wfb = _conv_weight_banded(params["wf"], w, wo, 2, 1, l2)         # (4*128, Wo*Cout)
    w12b = jnp.concatenate([w1b, w2b], axis=0)                       # (768, 128)

    b1l = jnp.tile(params["b1"].astype(jnp.float32), w)              # (W*Cout,)
    b2l = jnp.tile(params["b2"].astype(jnp.float32), w)
    bfl = jnp.pad(jnp.tile(params["bf"].astype(jnp.float32), wo), (0, l2 - wo * cout))
    biasrows = jnp.stack([b1l, b2l, bfl], axis=0)                    # (3, 128)

    bnp = jnp.stack([params["g1"], params["bt1"], params["g2"], params["bt2"]],
                    axis=0).astype(jnp.float32)                      # (4, Cout)

    gmat = jnp.tile(jnp.eye(cout, dtype=jnp.float32), (w, 1))        # (W*Cout, Cout) pooling
    gmat_t = jnp.transpose(gmat)                                     # (Cout, W*Cout) broadcast
    return dict(w12b=w12b, wfb=wfb, biasrows=biasrows, bnp=bnp, gmat=gmat, gmat_t=gmat_t)


def block_forward(x_nchw, prepped):
    """Block forward (downsample=True): (N, Cin, H, W) -> (N, Cout, H/2, W/2)."""
    n, cin, h, w = x_nchw.shape
    cout = prepped["bnp"].shape[1]
    hp = h + 2
    ho, wo = h // 2, w // 2
    wcout = w * cout                                                 # = 128
    l1 = LANE
    count = n * h * w                                                # BN population / channel

    # Per-call input layout: NCHW -> H-padded, lane-packed, flat (Hp*N, 128) bf16.
    x = jnp.transpose(x_nchw, (0, 2, 3, 1)).astype(jnp.float32)
    xpad = jnp.pad(x, ((0, 0), (1, 1), (0, 0), (0, 0))).reshape(n, hp, w * cin)
    xpad = jnp.pad(xpad, ((0, 0), (0, 0), (0, l1 - w * cin)))
    xpad = jnp.transpose(xpad, (1, 0, 2)).reshape(hp * n, l1).astype(jnp.bfloat16)

    def conv_rows(ref, kh, h_out, step):
        """Flat (rows*N, L) padded activation ref -> (h_out*N, kh*L) matmul LHS.

        Patch row (y, b) lane-concatenates padded rows step*y + i, i = 0..kh-1.
        step=2 (the stride-2 final conv) uses a leading-dim reshape + static
        index only -- the lane dim is never reshaped.
        """
        lanes = ref.shape[-1]
        pieces = []
        for i in range(kh):
            if step == 1:
                p = ref[i * n:(i + h_out) * n, :]
            else:
                p = ref[i * n:(i + step * h_out) * n, :]
                p = p.reshape(h_out, step, n, lanes)[:, 0].reshape(h_out * n, lanes)
            pieces.append(p)
        return jnp.concatenate(pieces, axis=-1)

    def kernel(xp_ref, w12_ref, wf_ref, bias_ref, bnp_ref, gm_ref, gmt_ref,
               out_ref, o1p_ref, o2p_ref):
        gm = gm_ref[...]                         # (W*Cout, Cout)
        gmt = gmt_ref[...]                       # (Cout, W*Cout)
        inv_cnt = 1.0 / float(count)

        def bn_relu(acc, b_lane, gamma, beta):
            # conv bias + ReLU + training-mode BN via one-pass sufficient stats (f32),
            # with sum / sum-sq stacked into a single tiny MXU dot (and likewise for
            # the per-channel scale/shift lane broadcast).
            hact = jnp.maximum(acc + b_lane, 0.0)                                 # (R, W*Cout)
            stats = jnp.concatenate(
                [jnp.sum(hact, axis=0, keepdims=True),
                 jnp.sum(hact * hact, axis=0, keepdims=True)], axis=0)            # (2, W*Cout)
            stats_c = jnp.dot(stats, gm, preferred_element_type=jnp.float32)      # (2, Cout)
            mean = stats_c[0:1] * inv_cnt
            var = jnp.maximum(stats_c[1:2] * inv_cnt - mean * mean, 0.0)          # biased var
            scale_c = gamma * jax.lax.rsqrt(var + EPS)
            shift_c = beta - mean * scale_c
            ss = jnp.concatenate([scale_c, shift_c], axis=0)                      # (2, Cout)
            ss_l = jnp.dot(ss, gmt, preferred_element_type=jnp.float32)           # (2, W*Cout)
            return hact * ss_l[0:1] + ss_l[1:2]

        zrow = jnp.zeros((n, wcout), jnp.bfloat16)

        # ---- stage 1: conv1 (3x3, pad 1) + bias + ReLU + BN1 ----
        patch1 = conv_rows(xp_ref, 3, h, 1)                                       # (H*N, 3*128) bf16
        acc1 = jnp.dot(patch1, w12_ref[0:3 * l1, :], preferred_element_type=jnp.float32)
        o1 = bn_relu(acc1, bias_ref[0:1, :], bnp_ref[0:1, :], bnp_ref[1:2, :])    # (H*N, 128) f32

        # H-halo scratch in bf16: zero only the pad rows, write the interior once.
        o1p_ref[0:n, :] = zrow
        o1p_ref[(h + 1) * n:(h + 2) * n, :] = zrow
        o1p_ref[n:(h + 1) * n, :] = o1.astype(jnp.bfloat16)

        # ---- stage 2: conv2 (3x3, pad 1) + bias + ReLU + BN2 ----
        patch2 = conv_rows(o1p_ref, 3, h, 1)                                      # (H*N, 3*128) bf16
        acc2 = jnp.dot(patch2, w12_ref[3 * l1:3 * l1 + 3 * wcout, :],
                       preferred_element_type=jnp.float32)
        o2 = bn_relu(acc2, bias_ref[1:2, :], bnp_ref[2:3, :], bnp_ref[3:4, :])

        o2p_ref[0:n, :] = zrow
        o2p_ref[(h + 1) * n:(h + 3) * n, :] = jnp.zeros((2 * n, wcout), jnp.bfloat16)
        o2p_ref[n:(h + 1) * n, :] = o2.astype(jnp.bfloat16)

        # ---- final: conv (4x4, stride 2, pad 1) + bias  [downsample=True branch] ----
        patchf = conv_rows(o2p_ref, 4, ho, 2)                                     # (Ho*N, 4*128) bf16
        accf = jnp.dot(patchf, wf_ref[...], preferred_element_type=jnp.float32)   # (Ho*N, Wo*Cout)
        out_ref[...] = accf + bias_ref[2:3, 0:wo * cout]

    vmem = pl.BlockSpec(memory_space=pltpu.MemorySpace.VMEM)
    out = pl.pallas_call(
        kernel,
        out_shape=jax.ShapeDtypeStruct((ho * n, wo * cout), jnp.float32),
        in_specs=[vmem] * 7,
        out_specs=vmem,
        scratch_shapes=[pltpu.VMEM(((h + 2) * n, wcout), jnp.bfloat16),   # o1 + H halo
                        pltpu.VMEM(((h + 3) * n, wcout), jnp.bfloat16)],  # o2 + H halo + overshoot
        compiler_params=pltpu.CompilerParams(vmem_limit_bytes=32 * 1024 * 1024),
    )(xpad, prepped["w12b"], prepped["wfb"], prepped["biasrows"],
      prepped["bnp"], prepped["gmat"], prepped["gmat_t"])

    # rows ordered (y, n), lanes (x, c)  ->  NCHW
    return out.reshape(ho, n, wo, cout).transpose(1, 3, 0, 2)


# ----------------------------- pure-JAX reference ---------------------------

def ref_block(x_nchw, p):
    x = jnp.transpose(x_nchw, (0, 2, 3, 1)).astype(jnp.float32)

    def conv(v, w_oihw, b, stride, pad):
        w_hwio = jnp.transpose(w_oihw, (2, 3, 1, 0))
        y = jax.lax.conv_general_dilated(
            v, w_hwio, window_strides=(stride, stride),
            padding=[(pad, pad), (pad, pad)],
            dimension_numbers=("NHWC", "HWIO", "NHWC"))
        return y + b

    def bn(v, g, bt):
        mean = jnp.mean(v, axis=(0, 1, 2), keepdims=True)
        var = jnp.mean((v - mean) ** 2, axis=(0, 1, 2), keepdims=True)
        return (v - mean) * jax.lax.rsqrt(var + EPS) * g + bt

    o = bn(jax.nn.relu(conv(x, p["w1"], p["b1"], 1, 1)), p["g1"], p["bt1"])
    o = bn(jax.nn.relu(conv(o, p["w2"], p["b2"], 1, 1)), p["g2"], p["bt2"])
    y = conv(o, p["wf"], p["bf"], 2, 1)
    return jnp.transpose(y, (0, 3, 1, 2))


# ----------------------------- main -----------------------------------------

if __name__ == "__main__":
    N, Cin, Cout, H, W = 2, 4, 8, 16, 16

    key = jax.random.PRNGKey(0)
    ks = jax.random.split(key, 12)

    def bf16r(a):
        # weights / inputs stored bf16-representable (matches the bf16 MXU operands)
        return a.astype(jnp.bfloat16).astype(jnp.float32)

    params = {
        # PyTorch-shaped conv weights (Cout, Cin, KH, KW)
        "w1": bf16r(0.1 * jax.random.normal(ks[0], (Cout, Cin, 3, 3), jnp.float32)),
        "b1": 0.1 * jax.random.normal(ks[1], (Cout,), jnp.float32),
        "w2": bf16r(0.1 * jax.random.normal(ks[2], (Cout, Cout, 3, 3), jnp.float32)),
        "b2": 0.1 * jax.random.normal(ks[3], (Cout,), jnp.float32),
        "wf": bf16r(0.1 * jax.random.normal(ks[4], (Cout, Cout, 4, 4), jnp.float32)),
        "bf": 0.1 * jax.random.normal(ks[5], (Cout,), jnp.float32),
        # BatchNorm affine params
        "g1": 1.0 + 0.1 * jax.random.normal(ks[6], (Cout,), jnp.float32),
        "bt1": 0.1 * jax.random.normal(ks[7], (Cout,), jnp.float32),
        "g2": 1.0 + 0.1 * jax.random.normal(ks[8], (Cout,), jnp.float32),
        "bt2": 0.1 * jax.random.normal(ks[9], (Cout,), jnp.float32),
    }
    x = bf16r(jax.random.normal(ks[10], (N, Cin, H, W), jnp.float32))

    prepped = prepare_block_params(params, H, W)      # one-time, parameter-only prep
    fwd = jax.jit(block_forward)
    y = jax.block_until_ready(fwd(x, prepped))
    y_ref = jax.block_until_ready(ref_block(x, params))

    assert y.shape == (N, Cout, H // 2, W // 2), y.shape
    max_err = float(jnp.max(jnp.abs(y - y_ref)))
    # bf16 matmul operands + two BatchNorm re-scalings -> ~1e-2 worst-case abs error
    assert jnp.allclose(y, y_ref, rtol=2e-2, atol=2e-2), max_err
    print("KERNEL_OK")
</pallas_src>

<mosaic_0001>
module attributes {stable_mosaic.version = 11 : i64} {
  func.func @kernel(%arg0: memref<36x128xbf16, #tpu.memory_space<vmem>>, %arg1: memref<768x128xbf16, #tpu.memory_space<vmem>>, %arg2: memref<512x64xbf16, #tpu.memory_space<vmem>>, %arg3: memref<3x128xf32, #tpu.memory_space<vmem>>, %arg4: memref<4x8xf32, #tpu.memory_space<vmem>>, %arg5: memref<128x8xf32, #tpu.memory_space<vmem>>, %arg6: memref<8x128xf32, #tpu.memory_space<vmem>>, %arg7: memref<16x64xf32, #tpu.memory_space<vmem>>, %arg8: memref<36x128xbf16, #tpu.memory_space<vmem>>, %arg9: memref<38x128xbf16, #tpu.memory_space<vmem>>) attributes {dimension_semantics = [], scalar_prefetch = 0 : i64, scratch_operands = 2 : i64, tpu.core_type = #tpu.core_type<tc>} {
    %c0 = arith.constant 0 : index
    %c0_0 = arith.constant 0 : index
    %0 = vector.load %arg5[%c0, %c0_0] : memref<128x8xf32, #tpu.memory_space<vmem>>, vector<128x8xf32>
    %c0_1 = arith.constant 0 : index
    %c0_2 = arith.constant 0 : index
    %1 = vector.load %arg6[%c0_1, %c0_2] : memref<8x128xf32, #tpu.memory_space<vmem>>, vector<8x128xf32>
    %cst = arith.constant 0.000000e+00 : bf16
    %2 = vector.broadcast %cst : bf16 to vector<2x128xbf16>
    %c0_3 = arith.constant 0 : index
    %c0_4 = arith.constant 0 : index
    %3 = vector.load %arg0[%c0_3, %c0_4] : memref<36x128xbf16, #tpu.memory_space<vmem>>, vector<32x128xbf16>
    %c2 = arith.constant 2 : index
    %c0_5 = arith.constant 0 : index
    %4 = vector.load %arg0[%c2, %c0_5] : memref<36x128xbf16, #tpu.memory_space<vmem>>, vector<32x128xbf16>
    %c4 = arith.constant 4 : index
    %c0_6 = arith.constant 0 : index
    %5 = vector.load %arg0[%c4, %c0_6] : memref<36x128xbf16, #tpu.memory_space<vmem>>, vector<32x128xbf16>
    %6 = tpu.concatenate %3, %4, %5 in 1 : vector<32x128xbf16>, vector<32x128xbf16>, vector<32x128xbf16> -> vector<32x384xbf16>
    %c0_7 = arith.constant 0 : index
    %c0_8 = arith.constant 0 : index
    %7 = vector.load %arg1[%c0_7, %c0_8] : memref<768x128xbf16, #tpu.memory_space<vmem>>, vector<384x128xbf16>
    %cst_9 = arith.constant dense<0.000000e+00> : vector<32x128xf32>
    %8 = tpu.matmul %6, %7, %cst_9 {dimension_numbers = #tpu.dot_dimension_numbers<[1], [0], [0], [1], [0, 0, 1, 1], [], []>} : vector<32x384xbf16>, vector<384x128xbf16>, vector<32x128xf32> -> vector<32x128xf32>
    %c0_10 = arith.constant 0 : index
    %c0_11 = arith.constant 0 : index
    %9 = vector.load %arg3[%c0_10, %c0_11] : memref<3x128xf32, #tpu.memory_space<vmem>>, vector<1x128xf32>
    %c0_12 = arith.constant 0 : index
    %c0_13 = arith.constant 0 : index
    %10 = vector.load %arg4[%c0_12, %c0_13] : memref<4x8xf32, #tpu.memory_space<vmem>>, vector<1x8xf32>
    %c1 = arith.constant 1 : index
    %c0_14 = arith.constant 0 : index
    %11 = vector.load %arg4[%c1, %c0_14] : memref<4x8xf32, #tpu.memory_space<vmem>>, vector<1x8xf32>
    %12 = vector.broadcast %9 : vector<1x128xf32> to vector<32x128xf32>
    %13 = arith.addf %8, %12 : vector<32x128xf32>
    %cst_15 = arith.constant 0.000000e+00 : f32
    %14 = vector.broadcast %cst_15 : f32 to vector<32x128xf32>
    %15 = arith.maximumf %13, %14 : vector<32x128xf32>
    %cst_16 = arith.constant dense<0.000000e+00> : vector<128xf32>
    %16 = vector.multi_reduction <add>, %15, %cst_16 [0] : vector<32x128xf32> to vector<128xf32>
    %17 = vector.shape_cast %16 : vector<128xf32> to vector<1x128xf32>
    %18 = arith.mulf %15, %15 : vector<32x128xf32>
    %cst_17 = arith.constant dense<0.000000e+00> : vector<128xf32>
    %19 = vector.multi_reduction <add>, %18, %cst_17 [0] : vector<32x128xf32> to vector<128xf32>
    %20 = vector.shape_cast %19 : vector<128xf32> to vector<1x128xf32>
    %21 = tpu.concatenate %17, %20 in 0 : vector<1x128xf32>, vector<1x128xf32> -> vector<2x128xf32>
    %cst_18 = arith.constant dense<0.000000e+00> : vector<2x8xf32>
    %22 = tpu.matmul %21, %0, %cst_18 {dimension_numbers = #tpu.dot_dimension_numbers<[1], [0], [0], [1], [0, 0, 1, 1], [], []>} : vector<2x128xf32>, vector<128x8xf32>, vector<2x8xf32> -> vector<2x8xf32>
    %23 = vector.extract_strided_slice %22 {offsets = [0, 0], sizes = [1, 8], strides = [1, 1]} : vector<2x8xf32> to vector<1x8xf32>
    %cst_19 = arith.constant 0.001953125 : f32
    %24 = vector.broadcast %cst_19 : f32 to vector<1x8xf32>
    %25 = arith.mulf %23, %24 : vector<1x8xf32>
    %26 = vector.extract_strided_slice %22 {offsets = [1, 0], sizes = [1, 8], strides = [1, 1]} : vector<2x8xf32> to vector<1x8xf32>
    %cst_20 = arith.constant 0.001953125 : f32
    %27 = vector.broadcast %cst_20 : f32 to vector<1x8xf32>
    %28 = arith.mulf %26, %27 : vector<1x8xf32>
    %29 = arith.mulf %25, %25 : vector<1x8xf32>
    %30 = arith.subf %28, %29 : vector<1x8xf32>
    %cst_21 = arith.constant 0.000000e+00 : f32
    %31 = vector.broadcast %cst_21 : f32 to vector<1x8xf32>
    %32 = arith.maximumf %30, %31 : vector<1x8xf32>
    %cst_22 = arith.constant 9.99999974E-6 : f32
    %33 = vector.broadcast %cst_22 : f32 to vector<1x8xf32>
    %34 = arith.addf %32, %33 : vector<1x8xf32>
    %35 = math.rsqrt %34 : vector<1x8xf32>
    %36 = arith.mulf %10, %35 : vector<1x8xf32>
    %37 = arith.mulf %25, %36 : vector<1x8xf32>
    %38 = arith.subf %11, %37 : vector<1x8xf32>
    %39 = tpu.concatenate %36, %38 in 0 : vector<1x8xf32>, vector<1x8xf32> -> vector<2x8xf32>
    %cst_23 = arith.constant dense<0.000000e+00> : vector<2x128xf32>
    %40 = tpu.matmul %39, %1, %cst_23 {dimension_numbers = #tpu.dot_dimension_numbers<[1], [0], [0], [1], [0, 0, 1, 1], [], []>} : vector<2x8xf32>, vector<8x128xf32>, vector<2x128xf32> -> vector<2x128xf32>
    %41 = vector.extract_strided_slice %40 {offsets = [0, 0], sizes = [1, 128], strides = [1, 1]} : vector<2x128xf32> to vector<1x128xf32>
    %42 = vector.broadcast %41 : vector<1x128xf32> to vector<32x128xf32>
    %43 = arith.mulf %15, %42 : vector<32x128xf32>
    %44 = vector.extract_strided_slice %40 {offsets = [1, 0], sizes = [1, 128], strides = [1, 1]} : vector<2x128xf32> to vector<1x128xf32>
    %45 = vector.broadcast %44 : vector<1x128xf32> to vector<32x128xf32>
    %46 = arith.addf %43, %45 : vector<32x128xf32>
    %c0_24 = arith.constant 0 : index
    %c0_25 = arith.constant 0 : index
    %47 = vector.load %arg8[%c0_24, %c0_25] : memref<36x128xbf16, #tpu.memory_space<vmem>>, vector<2x128xbf16>
    tpu.vector_store %arg8[%c0_24, %c0_25], %2 {strides = array<i32>} : memref<36x128xbf16, #tpu.memory_space<vmem>>, vector<2x128xbf16>,
    %c34 = arith.constant 34 : index
    %c0_26 = arith.constant 0 : index
    %48 = vector.load %arg8[%c34, %c0_26] : memref<36x128xbf16, #tpu.memory_space<vmem>>, vector<2x128xbf16>
    tpu.vector_store %arg8[%c34, %c0_26], %2 {strides = array<i32>} : memref<36x128xbf16, #tpu.memory_space<vmem>>, vector<2x128xbf16>,
    %49 = arith.truncf %46 : vector<32x128xf32> to vector<32x128xbf16>
    %c2_27 = arith.constant 2 : index
    %c0_28 = arith.constant 0 : index
    %50 = vector.load %arg8[%c2_27, %c0_28] : memref<36x128xbf16, #tpu.memory_space<vmem>>, vector<32x128xbf16>
    tpu.vector_store %arg8[%c2_27, %c0_28], %49 {strides = array<i32>} : memref<36x128xbf16, #tpu.memory_space<vmem>>, vector<32x128xbf16>,
    %c0_29 = arith.constant 0 : index
    %c0_30 = arith.constant 0 : index
    %51 = vector.load %arg8[%c0_29, %c0_30] : memref<36x128xbf16, #tpu.memory_space<vmem>>, vector<32x128xbf16>
    %c2_31 = arith.constant 2 : index
    %c0_32 = arith.constant 0 : index
    %52 = vector.load %arg8[%c2_31, %c0_32] : memref<36x128xbf16, #tpu.memory_space<vmem>>, vector<32x128xbf16>
    %c4_33 = arith.constant 4 : index
    %c0_34 = arith.constant 0 : index
    %53 = vector.load %arg8[%c4_33, %c0_34] : memref<36x128xbf16, #tpu.memory_space<vmem>>, vector<32x128xbf16>
    %54 = tpu.concatenate %51, %52, %53 in 1 : vector<32x128xbf16>, vector<32x128xbf16>, vector<32x128xbf16> -> vector<32x384xbf16>
    %c384 = arith.constant 384 : index
    %c0_35 = arith.constant 0 : index
    %55 = vector.load %arg1[%c384, %c0_35] : memref<768x128xbf16, #tpu.memory_space<vmem>>, vector<384x128xbf16>
    %cst_36 = arith.constant dense<0.000000e+00> : vector<32x128xf32>
    %56 = tpu.matmul %54, %55, %cst_36 {dimension_numbers = #tpu.dot_dimension_numbers<[1], [0], [0], [1], [0, 0, 1, 1], [], []>} : vector<32x384xbf16>, vector<384x128xbf16>, vector<32x128xf32> -> vector<32x128xf32>
    %c1_37 = arith.constant 1 : index
    %c0_38 = arith.constant 0 : index
    %57 = vector.load %arg3[%c1_37, %c0_38] : memref<3x128xf32, #tpu.memory_space<vmem>>, vector<1x128xf32>
    %c2_39 = arith.constant 2 : index
    %c0_40 = arith.constant 0 : index
    %58 = vector.load %arg4[%c2_39, %c0_40] : memref<4x8xf32, #tpu.memory_space<vmem>>, vector<1x8xf32>
    %c3 = arith.constant 3 : index
    %c0_41 = arith.constant 0 : index
    %59 = vector.load %arg4[%c3, %c0_41] : memref<4x8xf32, #tpu.memory_space<vmem>>, vector<1x8xf32>
    %60 = vector.broadcast %57 : vector<1x128xf32> to vector<32x128xf32>
    %61 = arith.addf %56, %60 : vector<32x128xf32>
    %cst_42 = arith.constant 0.000000e+00 : f32
    %62 = vector.broadcast %cst_42 : f32 to vector<32x128xf32>
    %63 = arith.maximumf %61, %62 : vector<32x128xf32>
    %cst_43 = arith.constant dense<0.000000e+00> : vector<128xf32>
    %64 = vector.multi_reduction <add>, %63, %cst_43 [0] : vector<32x128xf32> to vector<128xf32>
    %65 = vector.shape_cast %64 : vector<128xf32> to vector<1x128xf32>
    %66 = arith.mulf %63, %63 : vector<32x128xf32>
    %cst_44 = arith.constant dense<0.000000e+00> : vector<128xf32>
    %67 = vector.multi_reduction <add>, %66, %cst_44 [0] : vector<32x128xf32> to vector<128xf32>
    %68 = vector.shape_cast %67 : vector<128xf32> to vector<1x128xf32>
    %69 = tpu.concatenate %65, %68 in 0 : vector<1x128xf32>, vector<1x128xf32> -> vector<2x128xf32>
    %cst_45 = arith.constant dense<0.000000e+00> : vector<2x8xf32>
    %70 = tpu.matmul %69, %0, %cst_45 {dimension_numbers = #tpu.dot_dimension_numbers<[1], [0], [0], [1], [0, 0, 1, 1], [], []>} : vector<2x128xf32>, vector<128x8xf32>, vector<2x8xf32> -> vector<2x8xf32>
    %71 = vector.extract_strided_slice %70 {offsets = [0, 0], sizes = [1, 8], strides = [1, 1]} : vector<2x8xf32> to vector<1x8xf32>
    %cst_46 = arith.constant 0.001953125 : f32
    %72 = vector.broadcast %cst_46 : f32 to vector<1x8xf32>
    %73 = arith.mulf %71, %72 : vector<1x8xf32>
    %74 = vector.extract_strided_slice %70 {offsets = [1, 0], sizes = [1, 8], strides = [1, 1]} : vector<2x8xf32> to vector<1x8xf32>
    %cst_47 = arith.constant 0.001953125 : f32
    %75 = vector.broadcast %cst_47 : f32 to vector<1x8xf32>
    %76 = arith.mulf %74, %75 : vector<1x8xf32>
    %77 = arith.mulf %73, %73 : vector<1x8xf32>
    %78 = arith.subf %76, %77 : vector<1x8xf32>
    %cst_48 = arith.constant 0.000000e+00 : f32
    %79 = vector.broadcast %cst_48 : f32 to vector<1x8xf32>
    %80 = arith.maximumf %78, %79 : vector<1x8xf32>
    %cst_49 = arith.constant 9.99999974E-6 : f32
    %81 = vector.broadcast %cst_49 : f32 to vector<1x8xf32>
    %82 = arith.addf %80, %81 : vector<1x8xf32>
    %83 = math.rsqrt %82 : vector<1x8xf32>
    %84 = arith.mulf %58, %83 : vector<1x8xf32>
    %85 = arith.mulf %73, %84 : vector<1x8xf32>
    %86 = arith.subf %59, %85 : vector<1x8xf32>
    %87 = tpu.concatenate %84, %86 in 0 : vector<1x8xf32>, vector<1x8xf32> -> vector<2x8xf32>
    %cst_50 = arith.constant dense<0.000000e+00> : vector<2x128xf32>
    %88 = tpu.matmul %87, %1, %cst_50 {dimension_numbers = #tpu.dot_dimension_numbers<[1], [0], [0], [1], [0, 0, 1, 1], [], []>} : vector<2x8xf32>, vector<8x128xf32>, vector<2x128xf32> -> vector<2x128xf32>
    %89 = vector.extract_strided_slice %88 {offsets = [0, 0], sizes = [1, 128], strides = [1, 1]} : vector<2x128xf32> to vector<1x128xf32>
    %90 = vector.broadcast %89 : vector<1x128xf32> to vector<32x128xf32>
    %91 = arith.mulf %63, %90 : vector<32x128xf32>
    %92 = vector.extract_strided_slice %88 {offsets = [1, 0], sizes = [1, 128], strides = [1, 1]} : vector<2x128xf32> to vector<1x128xf32>
    %93 = vector.broadcast %92 : vector<1x128xf32> to vector<32x128xf32>
    %94 = arith.addf %91, %93 : vector<32x128xf32>
    %c0_51 = arith.constant 0 : index
    %c0_52 = arith.constant 0 : index
    %95 = vector.load %arg9[%c0_51, %c0_52] : memref<38x128xbf16, #tpu.memory_space<vmem>>, vector<2x128xbf16>
    tpu.vector_store %arg9[%c0_51, %c0_52], %2 {strides = array<i32>} : memref<38x128xbf16, #tpu.memory_space<vmem>>, vector<2x128xbf16>,
    %cst_53 = arith.constant 0.000000e+00 : bf16
    %96 = vector.broadcast %cst_53 : bf16 to vector<4x128xbf16>
    %c34_54 = arith.constant 34 : index
    %c0_55 = arith.constant 0 : index
    %97 = vector.load %arg9[%c34_54, %c0_55] : memref<38x128xbf16, #tpu.memory_space<vmem>>, vector<4x128xbf16>
    tpu.vector_store %arg9[%c34_54, %c0_55], %96 {strides = array<i32>} : memref<38x128xbf16, #tpu.memory_space<vmem>>, vector<4x128xbf16>,
    %98 = arith.truncf %94 : vector<32x128xf32> to vector<32x128xbf16>
    %c2_56 = arith.constant 2 : index
    %c0_57 = arith.constant 0 : index
    %99 = vector.load %arg9[%c2_56, %c0_57] : memref<38x128xbf16, #tpu.memory_space<vmem>>, vector<32x128xbf16>
    tpu.vector_store %arg9[%c2_56, %c0_57], %98 {strides = array<i32>} : memref<38x128xbf16, #tpu.memory_space<vmem>>, vector<32x128xbf16>,
    %c0_58 = arith.constant 0 : index
    %c0_59 = arith.constant 0 : index
    %100 = vector.load %arg9[%c0_58, %c0_59] : memref<38x128xbf16, #tpu.memory_space<vmem>>, vector<32x128xbf16>
    %101 = vector.shape_cast %100 : vector<32x128xbf16> to vector<8x2x2x128xbf16>
    %102 = vector.extract_strided_slice %101 {offsets = [0, 0, 0, 0], sizes = [8, 1, 2, 128], strides = [1, 1, 1, 1]} : vector<8x2x2x128xbf16> to vector<8x1x2x128xbf16>
    %103 = vector.shape_cast %102 : vector<8x1x2x128xbf16> to vector<8x2x128xbf16>
    %104 = vector.shape_cast %103 : vector<8x2x128xbf16> to vector<16x128xbf16>
    %c2_60 = arith.constant 2 : index
    %c0_61 = arith.constant 0 : index
    %105 = vector.load %arg9[%c2_60, %c0_61] : memref<38x128xbf16, #tpu.memory_space<vmem>>, vector<32x128xbf16>
    %106 = vector.shape_cast %105 : vector<32x128xbf16> to vector<8x2x2x128xbf16>
    %107 = vector.extract_strided_slice %106 {offsets = [0, 0, 0, 0], sizes = [8, 1, 2, 128], strides = [1, 1, 1, 1]} : vector<8x2x2x128xbf16> to vector<8x1x2x128xbf16>
    %108 = vector.shape_cast %107 : vector<8x1x2x128xbf16> to vector<8x2x128xbf16>
    %109 = vector.shape_cast %108 : vector<8x2x128xbf16> to vector<16x128xbf16>
    %c4_62 = arith.constant 4 : index
    %c0_63 = arith.constant 0 : index
    %110 = vector.load %arg9[%c4_62, %c0_63] : memref<38x128xbf16, #tpu.memory_space<vmem>>, vector<32x128xbf16>
    %111 = vector.shape_cast %110 : vector<32x128xbf16> to vector<8x2x2x128xbf16>
    %112 = vector.extract_strided_slice %111 {offsets = [0, 0, 0, 0], sizes = [8, 1, 2, 128], strides = [1, 1, 1, 1]} : vector<8x2x2x128xbf16> to vector<8x1x2x128xbf16>
    %113 = vector.shape_cast %112 : vector<8x1x2x128xbf16> to vector<8x2x128xbf16>
    %114 = vector.shape_cast %113 : vector<8x2x128xbf16> to vector<16x128xbf16>
    %c6 = arith.constant 6 : index
    %c0_64 = arith.constant 0 : index
    %115 = vector.load %arg9[%c6, %c0_64] : memref<38x128xbf16, #tpu.memory_space<vmem>>, vector<32x128xbf16>
    %116 = vector.shape_cast %115 : vector<32x128xbf16> to vector<8x2x2x128xbf16>
    %117 = vector.extract_strided_slice %116 {offsets = [0, 0, 0, 0], sizes = [8, 1, 2, 128], strides = [1, 1, 1, 1]} : vector<8x2x2x128xbf16> to vector<8x1x2x128xbf16>
    %118 = vector.shape_cast %117 : vector<8x1x2x128xbf16> to vector<8x2x128xbf16>
    %119 = vector.shape_cast %118 : vector<8x2x128xbf16> to vector<16x128xbf16>
    %120 = tpu.concatenate %104, %109, %114, %119 in 1 : vector<16x128xbf16>, vector<16x128xbf16>, vector<16x128xbf16>, vector<16x128xbf16> -> vector<16x512xbf16>
    %c0_65 = arith.constant 0 : index
    %c0_66 = arith.constant 0 : index
    %121 = vector.load %arg2[%c0_65, %c0_66] : memref<512x64xbf16, #tpu.memory_space<vmem>>, vector<512x64xbf16>
    %cst_67 = arith.constant dense<0.000000e+00> : vector<16x64xf32>
    %122 = tpu.matmul %120, %121, %cst_67 {dimension_numbers = #tpu.dot_dimension_numbers<[1], [0], [0], [1], [0, 0, 1, 1], [], []>} : vector<16x512xbf16>, vector<512x64xbf16>, vector<16x64xf32> -> vector<16x64xf32>
    %c2_68 = arith.constant 2 : index
    %c0_69 = arith.constant 0 : index
    %123 = vector.load %arg3[%c2_68, %c0_69] : memref<3x128xf32, #tpu.memory_space<vmem>>, vector<1x64xf32>
    %124 = vector.broadcast %123 : vector<1x64xf32> to vector<16x64xf32>
    %125 = arith.addf %122, %124 : vector<16x64xf32>
    %c0_70 = arith.constant 0 : index
    %c0_71 = arith.constant 0 : index
    %126 = vector.load %arg7[%c0_70, %c0_71] : memref<16x64xf32, #tpu.memory_space<vmem>>, vector<16x64xf32>
    tpu.vector_store %arg7[%c0_70, %c0_71], %125 {strides = array<i32>} : memref<16x64xf32, #tpu.memory_space<vmem>>, vector<16x64xf32>,
    return
  }
}

</mosaic_0001>

<llo_original>
// kernel: block_forward.1
$region0: #{block_forward.1}
  #allocation0 [shape = 'u32[]', space=smem, size = 0x4, offset = 0x4, fixed_abs, tag = 'smem constant byte address 0x4 - core index']
  #allocation1 [shape = 'u32[144,128]{1,0:T(1,128)}', space=vmem, size = 0x12000, scoped, tag = 'internal scratch']
  #allocation2 [shape = 'bf16[36,128]{1,0:T(8,128)(2,1)}', space=vmem, size = 0x2800, scoped, tag = 'scratch operand']
  #allocation3 [shape = 'bf16[38,128]{1,0:T(8,128)(2,1)}', space=vmem, size = 0x2800, scoped, tag = 'scratch operand']
  %s0 = inlined_call_operand.vmem [shape: bf16[36,128], index: 0, kind: input, shape index: {}]
  %s1 = inlined_call_operand.vmem [shape: bf16[768,128], index: 1, kind: input, shape index: {}]
  %s2 = inlined_call_operand.vmem [shape: bf16[512,64], index: 2, kind: input, shape index: {}]
  %s3 = inlined_call_operand.vmem [shape: f32[3,128], index: 3, kind: input, shape index: {}]
  %s4 = inlined_call_operand.vmem [shape: f32[4,8], index: 4, kind: input, shape index: {}]
  %s5 = inlined_call_operand.vmem [shape: f32[128,8], index: 5, kind: input, shape index: {}]
  %s6 = inlined_call_operand.vmem [shape: f32[8,128], index: 6, kind: input, shape index: {}]
  %s7 = inlined_call_operand.vmem [shape: f32[16,64], index: 7, kind: output, shape index: {}]
  %s8 = sld [smem:[#allocation0]]
  $region38: #{block_forward.1} parent=0
    _
  %s10 = ssub.s32 1, %s8
  %s11 = scalar_select 0, %s10, %s8
  // Predicated region
  $region2: #{block_forward.1} parent=0 // pred_check
    _
  $region3: #{block_forward.1} parent=0 // pred_check_branch
    %13 = sbr.rel (0) target = $region5
  $region4: #{block_forward.1} parent=0 // pred_region
    _
  $region5: #{block_forward.1} parent=0 // pred_fallthru
    _
  // Predicated region
  $region6: #{block_forward.1} parent=0 // pred_check
    _
  $region7: #{block_forward.1} parent=0 // pred_check_branch
    %15 = sbr.rel (0) target = $region9
  $region8: #{block_forward.1} parent=0 // pred_region
    _
  $region9: #{block_forward.1} parent=0 // pred_fallthru
    _
  // Predicated region
  $region10: #{block_forward.1} parent=0 // pred_check
    _
  $region11: #{block_forward.1} parent=0 // pred_check_branch
    %17 = sbr.rel (0) target = $region13
  $region12: #{block_forward.1} parent=0 // pred_region
    _
  $region13: #{block_forward.1} parent=0 // pred_fallthru
    _
  // Predicated region
  $region14: #{block_forward.1} parent=0 // pred_check
    _
  $region15: #{block_forward.1} parent=0 // pred_check_branch
    %19 = sbr.rel (0) target = $region17
  $region16: #{block_forward.1} parent=0 // pred_region
    _
  $region17: #{block_forward.1} parent=0 // pred_fallthru
    _
  // Predicated region
  $region18: #{block_forward.1} parent=0 // pred_check
    _
  $region19: #{block_forward.1} parent=0 // pred_check_branch
    %21 = sbr.rel (0) target = $region21
  $region20: #{block_forward.1} parent=0 // pred_region
    _
  $region21: #{block_forward.1} parent=0 // pred_fallthru
    _
  // Predicated region
  $region22: #{block_forward.1} parent=0 // pred_check
    _
  $region23: #{block_forward.1} parent=0 // pred_check_branch
    %23 = sbr.rel (0) target = $region25
  $region24: #{block_forward.1} parent=0 // pred_region
    _
  $region25: #{block_forward.1} parent=0 // pred_fallthru
    _
  // Predicated region
  $region26: #{block_forward.1} parent=0 // pred_check
    _
  $region27: #{block_forward.1} parent=0 // pred_check_branch
    %25 = sbr.rel (0) target = $region29
  $region28: #{block_forward.1} parent=0 // pred_region
    _
  $region29: #{block_forward.1} parent=0 // pred_fallthru
    _
  %v27 = vld [vmem:[%s5] sm:$0xff]
  %v28 = vld [vmem:[%s5 + $0x8] sm:$0xff]
  %v29 = vld [vmem:[%s5 + $0x10] sm:$0xff]
  %v30 = vld [vmem:[%s5 + $0x18] sm:$0xff]
  %v31 = vld [vmem:[%s5 + $0x20] sm:$0xff]
  %v32 = vld [vmem:[%s5 + $0x28] sm:$0xff]
  %v33 = vld [vmem:[%s5 + $0x30] sm:$0xff]
  %v34 = vld [vmem:[%s5 + $0x38] sm:$0xff]
  %v35 = vld [vmem:[%s5 + $0x40] sm:$0xff]
  %v36 = vld [vmem:[%s5 + $0x48] sm:$0xff]
  %v37 = vld [vmem:[%s5 + $0x50] sm:$0xff]
  %v38 = vld [vmem:[%s5 + $0x58] sm:$0xff]
  %v39 = vld [vmem:[%s5 + $0x60] sm:$0xff]
  %v40 = vld [vmem:[%s5 + $0x68] sm:$0xff]
  %v41 = vld [vmem:[%s5 + $0x70] sm:$0xff]
  %v42 = vld [vmem:[%s5 + $0x78] sm:$0xff]
  %v43 = vld [vmem:[%s6] sm:$0xff]
  %v44 = vld [vmem:[%s0] sm:$0xf]
  %v45 = vld [vmem:[%s0 + $0x4] sm:$0xf]
  %v46 = vld [vmem:[%s0 + $0x8] sm:$0xf]
  %v47 = vld [vmem:[%s0 + $0xc] sm:$0xf]
  %v48 = vld [vmem:[%s0] sm:$0xe]
  %v49 = vld [vmem:[%s0 + $0x10] sm:$0x1]
  %v50 = vld [vmem:[%s0] sm:$0xc]
  %v51 = vld [vmem:[%s0 + $0x10] sm:$0x3]
  %v56 = vunpack.c.l.b16 %v44
  %v57 = vunpack.c.l.b16 %v45
  %v58 = vunpack.c.l.b16 %v46
  %v59 = vunpack.c.l.b16 %v47
  %v60 = vpack.c.b16 %v57, %v56
  %v61 = vpack.c.b16 %v59, %v58
  %v66 = vunpack.c.l.b16 %v48
  %v67 = vunpack.c.l.b16 %v49
  %v68 = vpack.c.b16 %v57, %v66
  %v69 = vpack.c.b16 %v67, %v67
  %vm70 = vcmask 1046528
  %v71 = vrot.slane %v68, 1
  %v72 = vrot.slane %v61, 1
  %v73 = vsel %vm70, %v71, %v72
  %v74 = vrot.slane %v69, 1
  %v75 = vsel %vm70, %v72, %v74
  %v80 = vunpack.c.l.b16 %v50
  %v81 = vunpack.c.l.b16 %v51
  %v82 = vpack.c.b16 %v57, %v80
  %v83 = vpack.c.b16 %v81, %v81
  %vm84 = vcmask 1045504
  %v85 = vrot.slane %v82, 2
  %v86 = vrot.slane %v61, 2
  %v87 = vsel %vm84, %v85, %v86
  %v88 = vrot.slane %v83, 2
  %v89 = vsel %vm84, %v86, %v88
  %v92 = vld [vmem:[%s1] sm:$0xf]
  %v93 = vld [vmem:[%s1 + $0x4] sm:$0xf]
  %v94 = vld [vmem:[%s1 + $0x8] sm:$0xf]
  %v95 = vld [vmem:[%s1 + $0xc] sm:$0xf]
  %v96 = vld [vmem:[%s1 + $0x10] sm:$0xf]
  %v97 = vld [vmem:[%s1 + $0x14] sm:$0xf]
  %v98 = vld [vmem:[%s1 + $0x18] sm:$0xf]
  %v99 = vld [vmem:[%s1 + $0x1c] sm:$0xf]
  %v100 = vld [vmem:[%s1 + $0x20] sm:$0xf]
  %v101 = vld [vmem:[%s1 + $0x24] sm:$0xf]
  %v102 = vld [vmem:[%s1 + $0x28] sm:$0xf]
  %v103 = vld [vmem:[%s1 + $0x2c] sm:$0xf]
  %v104 = vld [vmem:[%s1 + $0x30] sm:$0xf]
  %v105 = vld [vmem:[%s1 + $0x34] sm:$0xf]
  %v106 = vld [vmem:[%s1 + $0x38] sm:$0xf]
  %v107 = vld [vmem:[%s1 + $0x3c] sm:$0xf]
  %v108 = vld [vmem:[%s1 + $0x40] sm:$0xf]
  %v109 = vld [vmem:[%s1 + $0x44] sm:$0xf]
  %v110 = vld [vmem:[%s1 + $0x48] sm:$0xf]
  %v111 = vld [vmem:[%s1 + $0x4c] sm:$0xf]
  %v112 = vld [vmem:[%s1 + $0x50] sm:$0xf]
  %v113 = vld [vmem:[%s1 + $0x54] sm:$0xf]
  %v114 = vld [vmem:[%s1 + $0x58] sm:$0xf]
  %v115 = vld [vmem:[%s1 + $0x5c] sm:$0xf]
  %v116 = vld [vmem:[%s1 + $0x60] sm:$0xf]
  %v117 = vld [vmem:[%s1 + $0x64] sm:$0xf]
  %v118 = vld [vmem:[%s1 + $0x68] sm:$0xf]
  %v119 = vld [vmem:[%s1 + $0x6c] sm:$0xf]
  %v120 = vld [vmem:[%s1 + $0x70] sm:$0xf]
  %v121 = vld [vmem:[%s1 + $0x74] sm:$0xf]
  %v122 = vld [vmem:[%s1 + $0x78] sm:$0xf]
  %v123 = vld [vmem:[%s1 + $0x7c] sm:$0xf]
  %v124 = vld [vmem:[%s1 + $0x80] sm:$0xf]
  %v125 = vld [vmem:[%s1 + $0x84] sm:$0xf]
  %v126 = vld [vmem:[%s1 + $0x88] sm:$0xf]
  %v127 = vld [vmem:[%s1 + $0x8c] sm:$0xf]
  %v128 = vld [vmem:[%s1 + $0x90] sm:$0xf]
  %v129 = vld [vmem:[%s1 + $0x94] sm:$0xf]
  %v130 = vld [vmem:[%s1 + $0x98] sm:$0xf]
  %v131 = vld [vmem:[%s1 + $0x9c] sm:$0xf]
  %v132 = vld [vmem:[%s1 + $0xa0] sm:$0xf]
  %v133 = vld [vmem:[%s1 + $0xa4] sm:$0xf]
  %v134 = vld [vmem:[%s1 + $0xa8] sm:$0xf]
  %v135 = vld [vmem:[%s1 + $0xac] sm:$0xf]
  %v136 = vld [vmem:[%s1 + $0xb0] sm:$0xf]
  %v137 = vld [vmem:[%s1 + $0xb4] sm:$0xf]
  %v138 = vld [vmem:[%s1 + $0xb8] sm:$0xf]
  %v139 = vld [vmem:[%s1 + $0xbc] sm:$0xf]
  %v140 = vld [vmem:[%s3] sm:$0x1]
  %v141 = vld [vmem:[%s4] sm:$0x1]
  %v142 = vld [vmem:[%s4 + $0x1] sm:$0x1]
  %v143 = vlaneseq
  %v144 = vshrl.u32 %v143, 7
  %v145 = vsub.s32 0, %v144
  %v146 = vrot.slane %v140, %v145
  %v195 = vunpack.c.l.b16 %v92
  %v196 = vunpack.c.l.b16 %v93
  %v197 = vunpack.c.l.b16 %v94
  %v198 = vunpack.c.l.b16 %v95
  %v199 = vunpack.c.l.b16 %v96
  %v200 = vunpack.c.l.b16 %v97
  %v201 = vunpack.c.l.b16 %v98
  %v202 = vunpack.c.l.b16 %v99
  %v203 = vunpack.c.l.b16 %v100
  %v204 = vunpack.c.l.b16 %v101
  %v205 = vunpack.c.l.b16 %v102
  %v206 = vunpack.c.l.b16 %v103
  %v207 = vunpack.c.l.b16 %v104
  %v208 = vunpack.c.l.b16 %v105
  %v209 = vunpack.c.l.b16 %v106
  %v210 = vunpack.c.l.b16 %v107
  %v211 = vunpack.c.l.b16 %v108
  %v212 = vunpack.c.l.b16 %v109
  %v213 = vunpack.c.l.b16 %v110
  %v214 = vunpack.c.l.b16 %v111
  %v215 = vunpack.c.l.b16 %v112
  %v216 = vunpack.c.l.b16 %v113
  %v217 = vunpack.c.l.b16 %v114
  %v218 = vunpack.c.l.b16 %v115
  %v219 = vunpack.c.l.b16 %v116
  %v220 = vunpack.c.l.b16 %v117
  %v221 = vunpack.c.l.b16 %v118
  %v222 = vunpack.c.l.b16 %v119
  %v223 = vunpack.c.l.b16 %v120
  %v224 = vunpack.c.l.b16 %v121
  %v225 = vunpack.c.l.b16 %v122
  %v226 = vunpack.c.l.b16 %v123
  %v227 = vunpack.c.l.b16 %v124
  %v228 = vunpack.c.l.b16 %v125
  %v229 = vunpack.c.l.b16 %v126
  %v230 = vunpack.c.l.b16 %v127
  %v231 = vunpack.c.l.b16 %v128
  %v232 = vunpack.c.l.b16 %v129
  %v233 = vunpack.c.l.b16 %v130
  %v234 = vunpack.c.l.b16 %v131
  %v235 = vunpack.c.l.b16 %v132
  %v236 = vunpack.c.l.b16 %v133
  %v237 = vunpack.c.l.b16 %v134
  %v238 = vunpack.c.l.b16 %v135
  %v239 = vunpack.c.l.b16 %v136
  %v240 = vunpack.c.l.b16 %v137
  %v241 = vunpack.c.l.b16 %v138
  %v242 = vunpack.c.l.b16 %v139
  %v243 = vpack.c.b16 %v196, %v195
  %v244 = vpack.c.b16 %v198, %v197
  %v245 = vpack.c.b16 %v200, %v199
  %v246 = vpack.c.b16 %v202, %v201
  %v247 = vpack.c.b16 %v204, %v203
  %v248 = vpack.c.b16 %v206, %v205
  %v249 = vpack.c.b16 %v208, %v207
  %v250 = vpack.c.b16 %v210, %v209
  %v251 = vpack.c.b16 %v212, %v211
  %v252 = vpack.c.b16 %v214, %v213
  %v253 = vpack.c.b16 %v216, %v215
  %v254 = vpack.c.b16 %v218, %v217
  %v255 = vpack.c.b16 %v220, %v219
  %v256 = vpack.c.b16 %v222, %v221
  %v257 = vpack.c.b16 %v224, %v223
  %v258 = vpack.c.b16 %v226, %v225
  %v259 = vpack.c.b16 %v228, %v227
  %v260 = vpack.c.b16 %v230, %v229
  %v261 = vpack.c.b16 %v232, %v231
  %v262 = vpack.c.b16 %v234, %v233
  %v263 = vpack.c.b16 %v236, %v235
  %v264 = vpack.c.b16 %v238, %v237
  %v265 = vpack.c.b16 %v240, %v239
  %v266 = vpack.c.b16 %v242, %v241
  %291 = vmatprep.subr.bf16.mxu0 0
  %292 = vmatpush1.bf16.msra.mxu0 %v250
  %293 = vmatprep.subr.bf16.mxu0 0
  %294 = vmatpush1.bf16.msra.mxu0 %v249
  %295 = vmatprep.subr.bf16.mxu0 0
  %296 = vmatpush1.bf16.msra.mxu0 %v248
  %297 = vmatprep.subr.bf16.mxu0 0
  %298 = vmatpush1.bf16.msra.mxu0 %v247
  %299 = vmatprep.subr.bf16.mxu0 0
  %300 = vmatpush1.bf16.msra.mxu0 %v246
  %301 = vmatprep.subr.bf16.mxu0 0
  %302 = vmatpush1.bf16.msra.mxu0 %v245
  %303 = vmatprep.subr.bf16.mxu0 0
  %304 = vmatpush1.bf16.msra.mxu0 %v244
  %305 = vmatprep.subr.bf16.mxu0 0
  %306 = vmatpush1.bf16.msra.mxu0 %v243
  %307 = vmatprep.subr.bf16.mxu0 0
  %308 = vmatpush2.bf16.msra.mxu0 %v258
  %309 = vmatprep.subr.bf16.mxu0 0
  %310 = vmatpush2.bf16.msra.mxu0 %v257
  %311 = vmatprep.subr.bf16.mxu0 0
  %312 = vmatpush2.bf16.msra.mxu0 %v256
  %313 = vmatprep.subr.bf16.mxu0 0
  %314 = vmatpush2.bf16.msra.mxu0 %v255
  %315 = vmatprep.subr.bf16.mxu0 0
  %316 = vmatpush2.bf16.msra.mxu0 %v254
  %317 = vmatprep.subr.bf16.mxu0 0
  %318 = vmatpush2.bf16.msra.mxu0 %v253
  %319 = vmatprep.subr.bf16.mxu0 0
  %320 = vmatpush2.bf16.msra.mxu0 %v252
  %321 = vmatprep.subr.bf16.mxu0 0
  %322 = vmatpush2.bf16.msra.mxu0 %v251
  %323 = vmatprep.mubr.bf16.mxu0 %v73
  %324 = vmatmul.mubr.bf16.gmra.mxu0 %v60
  %v325 = vpop.f32.mrf.mxu0
  %v326 = vadd.f32 %v146, %v325
  %v327 = vpop.f32.mrf.mxu0
  %v328 = vpop.f32.mrf.mxu0
  %v329 = vadd.f32 %v146, %v328
  %v330 = vpop.f32.mrf.mxu0
  %331 = vmatprep.mubr.bf16.mxu0 %v75
  %332 = vmatmul.mubr.bf16.gmra.mxu0 %v61
  %v333 = vpop.f32.mrf.mxu0
  %v334 = vadd.f32 %v146, %v333
  %v335 = vpop.f32.mrf.mxu0
  %v336 = vpop.f32.mrf.mxu0
  %v337 = vadd.f32 %v146, %v336
  %v338 = vpop.f32.mrf.mxu0
  %339 = vdwg.mxu0
  %340 = vmatprep.subr.bf16.mxu0 0
  %341 = vmatpush1.bf16.msra.mxu0 %v266
  %342 = vmatprep.subr.bf16.mxu0 0
  %343 = vmatpush1.bf16.msra.mxu0 %v265
  %344 = vmatprep.subr.bf16.mxu0 0
  %345 = vmatpush1.bf16.msra.mxu0 %v264
  %346 = vmatprep.subr.bf16.mxu0 0
  %347 = vmatpush1.bf16.msra.mxu0 %v263
  %348 = vmatprep.subr.bf16.mxu0 0
  %349 = vmatpush1.bf16.msra.mxu0 %v262
  %350 = vmatprep.subr.bf16.mxu0 0
  %351 = vmatpush1.bf16.msra.mxu0 %v261
  %352 = vmatprep.subr.bf16.mxu0 0
  %353 = vmatpush1.bf16.msra.mxu0 %v260
  %354 = vmatprep.subr.bf16.mxu0 0
  %355 = vmatpush1.bf16.msra.mxu0 %v259
  %356 = vmatprep.subr.bf16.mxu0 0
  %357 = vmatpush2.bf16.msra.mxu0 0
  %358 = vmatprep.subr.bf16.mxu0 0
  %359 = vmatpush2.bf16.msra.mxu0 0
  %360 = vmatprep.subr.bf16.mxu0 0
  %361 = vmatpush2.bf16.msra.mxu0 0
  %362 = vmatprep.subr.bf16.mxu0 0
  %363 = vmatpush2.bf16.msra.mxu0 0
  %364 = vmatprep.subr.bf16.mxu0 0
  %365 = vmatpush2.bf16.msra.mxu0 0
  %366 = vmatprep.subr.bf16.mxu0 0
  %367 = vmatpush2.bf16.msra.mxu0 0
  %368 = vmatprep.subr.bf16.mxu0 0
  %369 = vmatpush2.bf16.msra.mxu0 0
  %370 = vmatprep.subr.bf16.mxu0 0
  %371 = vmatpush2.bf16.msra.mxu0 0
  %372 = vmatprep.mubr.bf16.mxu0 0
  %373 = vmatmul.mubr.bf16.gmra.mxu0 %v87
  %v374 = vpop.f32.mrf.mxu0
  %v375 = vadd.f32 %v326, %v374
  %v376 = vpop.f32.mrf.mxu0
  %v377 = vpop.f32.mrf.mxu0
  %v378 = vadd.f32 %v329, %v377
  %v379 = vpop.f32.mrf.mxu0
  %380 = vmatprep.mubr.bf16.mxu0 0
  %381 = vmatmul.mubr.bf16.gmra.mxu0 %v89
  %v382 = vpop.f32.mrf.mxu0
  %v383 = vadd.f32 %v334, %v382
  %v384 = vpop.f32.mrf.mxu0
  %v385 = vpop.f32.mrf.mxu0
  %v386 = vadd.f32 %v337, %v385
  %v387 = vpop.f32.mrf.mxu0
  %388 = vdwg.mxu0
  %v389 = vmax.f32 %v375, 0.0
  %v390 = vmax.f32 %v378, 0.0
  %v391 = vmax.f32 %v383, 0.0
  %v392 = vmax.f32 %v386, 0.0
  %v393 = vadd.f32 %v389, %v390
  %v394 = vadd.f32 %v393, %v391
  %v395 = vadd.f32 %v394, %v392
  %v396 = vrot.slane %v395, 4
  %v397 = vadd.f32 %v395, %v396
  %v398 = vrot.slane %v397, 2
  %v399 = vadd.f32 %v397, %v398
  %v400 = vrot.slane %v399, 1
  %v401 = vadd.f32 %v399, %v400
  %v402 = vmul.f32 %v389, %v389
  %v403 = vmul.f32 %v390, %v390
  %v404 = vmul.f32 %v391, %v391
  %v405 = vmul.f32 %v392, %v392
  %v406 = vadd.f32 %v402, %v403
  %v407 = vadd.f32 %v406, %v404
  %v408 = vadd.f32 %v407, %v405
  %v409 = vrot.slane %v408, 4
  %v410 = vadd.f32 %v408, %v409
  %v411 = vrot.slane %v410, 2
  %v412 = vadd.f32 %v410, %v411
  %v413 = vrot.slane %v412, 1
  %v414 = vadd.f32 %v412, %v413
  %vm415 = vcmask 1040384
  %v416 = vsel %vm415, %v401, %v414
  %417 = vmatprep.subr.mxu0 0.0
  %418 = vmatpush1.msra.mxu0 %v42
  %419 = vmatprep.subr.mxu0 0.0
  %420 = vmatpush1.msra.mxu0 %v41
  %421 = vmatprep.subr.mxu0 0.0
  %422 = vmatpush1.msra.mxu0 %v40
  %423 = vmatprep.subr.mxu0 0.0
  %424 = vmatpush1.msra.mxu0 %v39
  %425 = vmatprep.subr.mxu0 0.0
  %426 = vmatpush1.msra.mxu0 %v38
  %427 = vmatprep.subr.mxu0 0.0
  %428 = vmatpush1.msra.mxu0 %v37
  %429 = vmatprep.subr.mxu0 0.0
  %430 = vmatpush1.msra.mxu0 %v36
  %431 = vmatprep.subr.mxu0 0.0
  %432 = vmatpush1.msra.mxu0 %v35
  %433 = vmatprep.subr.mxu0 0.0
  %434 = vmatpush1.msra.mxu0 %v34
  %435 = vmatprep.subr.mxu0 0.0
  %436 = vmatpush1.msra.mxu0 %v33
  %437 = vmatprep.subr.mxu0 0.0
  %438 = vmatpush1.msra.mxu0 %v32
  %439 = vmatprep.subr.mxu0 0.0
  %440 = vmatpush1.msra.mxu0 %v31
  %441 = vmatprep.subr.mxu0 0.0
  %442 = vmatpush1.msra.mxu0 %v30
  %443 = vmatprep.subr.mxu0 0.0
  %444 = vmatpush1.msra.mxu0 %v29
  %445 = vmatprep.subr.mxu0 0.0
  %446 = vmatpush1.msra.mxu0 %v28
  %447 = vmatprep.subr.mxu0 0.0
  %448 = vmatpush1.msra.mxu0 %v27
  %449 = vmatprep.subr.mxu0 0.0
  %450 = vmatpush2.msra.mxu0 0.0
  %451 = vmatprep.subr.mxu0 0.0
  %452 = vmatpush2.msra.mxu0 0.0
  %453 = vmatprep.subr.mxu0 0.0
  %454 = vmatpush2.msra.mxu0 0.0
  %455 = vmatprep.subr.mxu0 0.0
  %456 = vmatpush2.msra.mxu0 0.0
  %457 = vmatprep.subr.mxu0 0.0
  %458 = vmatpush2.msra.mxu0 0.0
  %459 = vmatprep.subr.mxu0 0.0
  %460 = vmatpush2.msra.mxu0 0.0
  %461 = vmatprep.subr.mxu0 0.0
  %462 = vmatpush2.msra.mxu0 0.0
  %463 = vmatprep.subr.mxu0 0.0
  %464 = vmatpush2.msra.mxu0 0.0
  %465 = vmatprep.subr.mxu0 0.0
  %466 = vmatpush2.msra.mxu0 0.0
  %467 = vmatprep.subr.mxu0 0.0
  %468 = vmatpush2.msra.mxu0 0.0
  %469 = vmatprep.subr.mxu0 0.0
  %470 = vmatpush2.msra.mxu0 0.0
  %471 = vmatprep.subr.mxu0 0.0
  %472 = vmatpush2.msra.mxu0 0.0
  %473 = vmatprep.subr.mxu0 0.0
  %474 = vmatpush2.msra.mxu0 0.0
  %475 = vmatprep.subr.mxu0 0.0
  %476 = vmatpush2.msra.mxu0 0.0
  %477 = vmatprep.subr.mxu0 0.0
  %478 = vmatpush2.msra.mxu0 0.0
  %479 = vmatprep.subr.mxu0 0.0
  %480 = vmatpush2.msra.mxu0 0.0
  %481 = vmatprep.mubr.f32.mxu0 0.0
  %482 = vmatmul.mubr.f32.gmra.mxu0 %v416
  %v483 = vpop.f32.mrf.mxu0
  %v484 = vadd.f32 0.0, %v483
  %v485 = vpop.f32.mrf.mxu0
  %486 = vdwg.mxu0
  %v487 = vmul.f32 %v484, 0.001953125
  %v488 = vmul.f32 %v487, %v487
  %v490 = vrot.slane %v488, 7
  %v492 = vsub.f32 %v487, %v490
  %v493 = vmax.f32 %v492, 0.0
  %v494 = vadd.f32 %v493, 1e-05
  %v495 = vrsqrt.pop %v494
  %v497 = vrot.slane %v495, 1
  %v499 = vmul.f32 %v141, %v497
  %v500 = vmul.f32 %v487, %v499
  %v501 = vsub.f32 %v142, %v500
  %v503 = vrot.slane %v501, 7
  %v505 = vsel %vm415, %v499, %v503
  %vm506 = vcmask 64512
  %v508 = vsel %vm506, %v505, 0
  %510 = vmatprep.subr.mxu0 0.0
  %511 = vmatpush1.msra.mxu0 0.0
  %512 = vmatprep.subr.mxu0 0.0
  %513 = vmatpush1.msra.mxu0 0.0
  %514 = vmatprep.subr.mxu0 0.0
  %515 = vmatpush1.msra.mxu0 0.0
  %516 = vmatprep.subr.mxu0 0.0
  %517 = vmatpush1.msra.mxu0 0.0
  %518 = vmatprep.subr.mxu0 0.0
  %519 = vmatpush1.msra.mxu0 0.0
  %520 = vmatprep.subr.mxu0 0.0
  %521 = vmatpush1.msra.mxu0 0.0
  %522 = vmatprep.subr.mxu0 0.0
  %523 = vmatpush1.msra.mxu0 0.0
  %524 = vmatprep.subr.mxu0 0.0
  %525 = vmatpush1.msra.mxu0 0.0
  %526 = vmatprep.subr.mxu0 0.0
  %527 = vmatpush1.msra.mxu0 0.0
  %528 = vmatprep.subr.mxu0 0.0
  %529 = vmatpush1.msra.mxu0 0.0
  %530 = vmatprep.subr.mxu0 0.0
  %531 = vmatpush1.msra.mxu0 0.0
  %532 = vmatprep.subr.mxu0 0.0
  %533 = vmatpush1.msra.mxu0 0.0
  %534 = vmatprep.subr.mxu0 0.0
  %535 = vmatpush1.msra.mxu0 0.0
  %536 = vmatprep.subr.mxu0 0.0
  %537 = vmatpush1.msra.mxu0 0.0
  %538 = vmatprep.subr.mxu0 0.0
  %539 = vmatpush1.msra.mxu0 0.0
  %540 = vmatprep.subr.mxu0 0.0
  %541 = vmatpush1.msra.mxu0 %v43
  %542 = vmatprep.subr.mxu0 0.0
  %543 = vmatpush2.msra.mxu0 0.0
  %544 = vmatprep.subr.mxu0 0.0
  %545 = vmatpush2.msra.mxu0 0.0
  %546 = vmatprep.subr.mxu0 0.0
  %547 = vmatpush2.msra.mxu0 0.0
  %548 = vmatprep.subr.mxu0 0.0
  %549 = vmatpush2.msra.mxu0 0.0
  %550 = vmatprep.subr.mxu0 0.0
  %551 = vmatpush2.msra.mxu0 0.0
  %552 = vmatprep.subr.mxu0 0.0
  %553 = vmatpush2.msra.mxu0 0.0
  %554 = vmatprep.subr.mxu0 0.0
  %555 = vmatpush2.msra.mxu0 0.0
  %556 = vmatprep.subr.mxu0 0.0
  %557 = vmatpush2.msra.mxu0 0.0
  %558 = vmatprep.subr.mxu0 0.0
  %559 = vmatpush2.msra.mxu0 0.0
  %560 = vmatprep.subr.mxu0 0.0
  %561 = vmatpush2.msra.mxu0 0.0
  %562 = vmatprep.subr.mxu0 0.0
  %563 = vmatpush2.msra.mxu0 0.0
  %564 = vmatprep.subr.mxu0 0.0
  %565 = vmatpush2.msra.mxu0 0.0
  %566 = vmatprep.subr.mxu0 0.0
  %567 = vmatpush2.msra.mxu0 0.0
  %568 = vmatprep.subr.mxu0 0.0
  %569 = vmatpush2.msra.mxu0 0.0
  %570 = vmatprep.subr.mxu0 0.0
  %571 = vmatpush2.msra.mxu0 0.0
  %572 = vmatprep.subr.mxu0 0.0
  %573 = vmatpush2.msra.mxu0 0.0
  %574 = vmatprep.mubr.f32.mxu0 0.0
  %575 = vmatmul.mubr.f32.gmra.mxu0 %v508
  %v576 = vpop.f32.mrf.mxu0
  %v577 = vadd.f32 0.0, %v576
  %v578 = vpop.f32.mrf.mxu0
  %579 = vdwg.mxu0
  %v580 = vlaneseq
  %v581 = vshrl.u32 %v580, 7
  %v582 = vsub.s32 0, %v581
  %v583 = vrot.slane %v577, %v582
  %v584 = vmul.f32 %v389, %v583
  %v585 = vmul.f32 %v390, %v583
  %v586 = vmul.f32 %v391, %v583
  %v587 = vmul.f32 %v392, %v583
  %v588 = vlaneseq
  %v589 = vshrl.u32 %v588, 7
  %v590 = vsub.s32 1, %v589
  %v591 = vrot.slane %v577, %v590
  %v592 = vadd.f32 %v584, %v591
  %v593 = vadd.f32 %v585, %v591
  %v594 = vadd.f32 %v586, %v591
  %v595 = vadd.f32 %v587, %v591
  %596 = vst [vmem:[#allocation2] sm:$0x1] 0
  %597 = vst [vmem:[#allocation2 + $0x10] sm:$0x2] 0
  %v598 = vpack.c.bf16 %v593, %v592
  %v599 = vpack.c.bf16 %v595, %v594
  %v602 = vunpack.c.l.b16 %v598
  %v603 = vunpack.c.h.b16 %v598
  %v604 = vunpack.c.l.b16 %v599
  %v605 = vunpack.c.h.b16 %v599
  %v606 = vpack.c.b16 %v602, %v602
  %v607 = vpack.c.b16 %v603, %v603
  %v608 = vpack.c.b16 %v604, %v604
  %v609 = vpack.c.b16 %v605, %v605
  %vm610 = vcmask 1040384
  %vm611 = vcmask 1044484
  %vm612 = vmor %vm610, %vm611
  %v613 = vrot.slane %v606, 7
  %v614 = vrot.slane %v613, 4
  %v615 = vrot.slane %v607, 7
  %v616 = vsel %vm612, %v614, %v615
  %v617 = vrot.slane %v615, 4
  %v618 = vrot.slane %v608, 7
  %v619 = vsel %vm612, %v617, %v618
  %v620 = vrot.slane %v618, 4
  %v621 = vrot.slane %v609, 7
  %v622 = vsel %vm612, %v620, %v621
  %v623 = vrot.slane %v621, 4
  %629 = vst [vmem:[#allocation2] sm:$0xe] %v613
  %630 = vst [vmem:[#allocation2 + $0x4] sm:$0xf] %v616
  %631 = vst [vmem:[#allocation2 + $0x8] sm:$0xf] %v619
  %632 = vst [vmem:[#allocation2 + $0xc] sm:$0xf] %v622
  %633 = vst [vmem:[#allocation2 + $0x10] sm:$0x1] %v623
  %v634 = vld [vmem:[#allocation2] sm:$0xf]
  %v635 = vld [vmem:[#allocation2 + $0x4] sm:$0xf]
  %v636 = vld [vmem:[#allocation2 + $0x8] sm:$0xf]
  %v637 = vld [vmem:[#allocation2 + $0xc] sm:$0xf]
  %v638 = vld [vmem:[#allocation2] sm:$0xe]
  %v639 = vld [vmem:[#allocation2 + $0x10] sm:$0x1]
  %v640 = vld [vmem:[#allocation2] sm:$0xc]
  %v641 = vld [vmem:[#allocation2 + $0x10] sm:$0x3]
  %v646 = vunpack.c.l.b16 %v634
  %v647 = vunpack.c.l.b16 %v635
  %v648 = vunpack.c.l.b16 %v636
  %v649 = vunpack.c.l.b16 %v637
  %v650 = vpack.c.b16 %v647, %v646
  %v651 = vpack.c.b16 %v649, %v648
  %v656 = vunpack.c.l.b16 %v638
  %v657 = vunpack.c.l.b16 %v639
  %v658 = vpack.c.b16 %v647, %v656
  %v659 = vpack.c.b16 %v657, %v657
  %v660 = vrot.slane %v658, 1
  %v661 = vrot.slane %v651, 1
  %v662 = vsel %vm70, %v660, %v661
  %v663 = vrot.slane %v659, 1
  %v664 = vsel %vm70, %v661, %v663
  %v669 = vunpack.c.l.b16 %v640
  %v670 = vunpack.c.l.b16 %v641
  %v671 = vpack.c.b16 %v647, %v669
  %v672 = vpack.c.b16 %v670, %v670
  %v673 = vrot.slane %v671, 2
  %v674 = vrot.slane %v651, 2
  %v675 = vsel %vm84, %v673, %v674
  %v676 = vrot.slane %v672, 2
  %v677 = vsel %vm84, %v674, %v676
  %v680 = vld [vmem:[%s1 + $0xc0] sm:$0xf]
  %v681 = vld [vmem:[%s1 + $0xc4] sm:$0xf]
  %v682 = vld [vmem:[%s1 + $0xc8] sm:$0xf]
  %v683 = vld [vmem:[%s1 + $0xcc] sm:$0xf]
  %v684 = vld [vmem:[%s1 + $0xd0] sm:$0xf]
  %v685 = vld [vmem:[%s1 + $0xd4] sm:$0xf]
  %v686 = vld [vmem:[%s1 + $0xd8] sm:$0xf]
  %v687 = vld [vmem:[%s1 + $0xdc] sm:$0xf]
  %v688 = vld [vmem:[%s1 + $0xe0] sm:$0xf]
  %v689 = vld [vmem:[%s1 + $0xe4] sm:$0xf]
  %v690 = vld [vmem:[%s1 + $0xe8] sm:$0xf]
  %v691 = vld [vmem:[%s1 + $0xec] sm:$0xf]
  %v692 = vld [vmem:[%s1 + $0xf0] sm:$0xf]
  %v693 = vld [vmem:[%s1 + $0xf4] sm:$0xf]
  %v694 = vld [vmem:[%s1 + $0xf8] sm:$0xf]
  %v695 = vld [vmem:[%s1 + $0xfc] sm:$0xf]
  %v696 = vld [vmem:[%s1 + $0x100] sm:$0xf]
  %v697 = vld [vmem:[%s1 + $0x104] sm:$0xf]
  %v698 = vld [vmem:[%s1 + $0x108] sm:$0xf]
  %v699 = vld [vmem:[%s1 + $0x10c] sm:$0xf]
  %v700 = vld [vmem:[%s1 + $0x110] sm:$0xf]
  %v701 = vld [vmem:[%s1 + $0x114] sm:$0xf]
  %v702 = vld [vmem:[%s1 + $0x118] sm:$0xf]
  %v703 = vld [vmem:[%s1 + $0x11c] sm:$0xf]
  %v704 = vld [vmem:[%s1 + $0x120] sm:$0xf]
  %v705 = vld [vmem:[%s1 + $0x124] sm:$0xf]
  %v706 = vld [vmem:[%s1 + $0x128] sm:$0xf]
  %v707 = vld [vmem:[%s1 + $0x12c] sm:$0xf]
  %v708 = vld [vmem:[%s1 + $0x130] sm:$0xf]
  %v709 = vld [vmem:[%s1 + $0x134] sm:$0xf]
  %v710 = vld [vmem:[%s1 + $0x138] sm:$0xf]
  %v711 = vld [vmem:[%s1 + $0x13c] sm:$0xf]
  %v712 = vld [vmem:[%s1 + $0x140] sm:$0xf]
  %v713 = vld [vmem:[%s1 + $0x144] sm:$0xf]
  %v714 = vld [vmem:[%s1 + $0x148] sm:$0xf]
  %v715 = vld [vmem:[%s1 + $0x14c] sm:$0xf]
  %v716 = vld [vmem:[%s1 + $0x150] sm:$0xf]
  %v717 = vld [vmem:[%s1 + $0x154] sm:$0xf]
  %v718 = vld [vmem:[%s1 + $0x158] sm:$0xf]
  %v719 = vld [vmem:[%s1 + $0x15c] sm:$0xf]
  %v720 = vld [vmem:[%s1 + $0x160] sm:$0xf]
  %v721 = vld [vmem:[%s1 + $0x164] sm:$0xf]
  %v722 = vld [vmem:[%s1 + $0x168] sm:$0xf]
  %v723 = vld [vmem:[%s1 + $0x16c] sm:$0xf]
  %v724 = vld [vmem:[%s1 + $0x170] sm:$0xf]
  %v725 = vld [vmem:[%s1 + $0x174] sm:$0xf]
  %v726 = vld [vmem:[%s1 + $0x178] sm:$0xf]
  %v727 = vld [vmem:[%s1 + $0x17c] sm:$0xf]
  %v728 = vld [vmem:[%s3 + $0x1] sm:$0x1]
  %v729 = vld [vmem:[%s4 + $0x2] sm:$0x1]
  %v730 = vld [vmem:[%s4 + $0x3] sm:$0x1]
  %v731 = vlaneseq
  %v732 = vshrl.u32 %v731, 7
  %v733 = vsub.s32 0, %v732
  %v734 = vrot.slane %v728, %v733
  %v783 = vunpack.c.l.b16 %v680
  %v784 = vunpack.c.l.b16 %v681
  %v785 = vunpack.c.l.b16 %v682
  %v786 = vunpack.c.l.b16 %v683
  %v787 = vunpack.c.l.b16 %v684
  %v788 = vunpack.c.l.b16 %v685
  %v789 = vunpack.c.l.b16 %v686
  %v790 = vunpack.c.l.b16 %v687
  %v791 = vunpack.c.l.b16 %v688
  %v792 = vunpack.c.l.b16 %v689
  %v793 = vunpack.c.l.b16 %v690
  %v794 = vunpack.c.l.b16 %v691
  %v795 = vunpack.c.l.b16 %v692
  %v796 = vunpack.c.l.b16 %v693
  %v797 = vunpack.c.l.b16 %v694
  %v798 = vunpack.c.l.b16 %v695
  %v799 = vunpack.c.l.b16 %v696
  %v800 = vunpack.c.l.b16 %v697
  %v801 = vunpack.c.l.b16 %v698
  %v802 = vunpack.c.l.b16 %v699
  %v803 = vunpack.c.l.b16 %v700
  %v804 = vunpack.c.l.b16 %v701
  %v805 = vunpack.c.l.b16 %v702
  %v806 = vunpack.c.l.b16 %v703
  %v807 = vunpack.c.l.b16 %v704
  %v808 = vunpack.c.l.b16 %v705
  %v809 = vunpack.c.l.b16 %v706
  %v810 = vunpack.c.l.b16 %v707
  %v811 = vunpack.c.l.b16 %v708
  %v812 = vunpack.c.l.b16 %v709
  %v813 = vunpack.c.l.b16 %v710
  %v814 = vunpack.c.l.b16 %v711
  %v815 = vunpack.c.l.b16 %v712
  %v816 = vunpack.c.l.b16 %v713
  %v817 = vunpack.c.l.b16 %v714
  %v818 = vunpack.c.l.b16 %v715
  %v819 = vunpack.c.l.b16 %v716
  %v820 = vunpack.c.l.b16 %v717
  %v821 = vunpack.c.l.b16 %v718
  %v822 = vunpack.c.l.b16 %v719
  %v823 = vunpack.c.l.b16 %v720
  %v824 = vunpack.c.l.b16 %v721
  %v825 = vunpack.c.l.b16 %v722
  %v826 = vunpack.c.l.b16 %v723
  %v827 = vunpack.c.l.b16 %v724
  %v828 = vunpack.c.l.b16 %v725
  %v829 = vunpack.c.l.b16 %v726
  %v830 = vunpack.c.l.b16 %v727
  %v831 = vpack.c.b16 %v784, %v783
  %v832 = vpack.c.b16 %v786, %v785
  %v833 = vpack.c.b16 %v788, %v787
  %v834 = vpack.c.b16 %v790, %v789
  %v835 = vpack.c.b16 %v792, %v791
  %v836 = vpack.c.b16 %v794, %v793
  %v837 = vpack.c.b16 %v796, %v795
  %v838 = vpack.c.b16 %v798, %v797
  %v839 = vpack.c.b16 %v800, %v799
  %v840 = vpack.c.b16 %v802, %v801
  %v841 = vpack.c.b16 %v804, %v803
  %v842 = vpack.c.b16 %v806, %v805
  %v843 = vpack.c.b16 %v808, %v807
  %v844 = vpack.c.b16 %v810, %v809
  %v845 = vpack.c.b16 %v812, %v811
  %v846 = vpack.c.b16 %v814, %v813
  %v847 = vpack.c.b16 %v816, %v815
  %v848 = vpack.c.b16 %v818, %v817
  %v849 = vpack.c.b16 %v820, %v819
  %v850 = vpack.c.b16 %v822, %v821
  %v851 = vpack.c.b16 %v824, %v823
  %v852 = vpack.c.b16 %v826, %v825
  %v853 = vpack.c.b16 %v828, %v827
  %v854 = vpack.c.b16 %v830, %v829
  %879 = vmatprep.subr.bf16.mxu0 0
  %880 = vmatpush1.bf16.msra.mxu0 %v838
  %881 = vmatprep.subr.bf16.mxu0 0
  %882 = vmatpush1.bf16.msra.mxu0 %v837
  %883 = vmatprep.subr.bf16.mxu0 0
  %884 = vmatpush1.bf16.msra.mxu0 %v836
  %885 = vmatprep.subr.bf16.mxu0 0
  %886 = vmatpush1.bf16.msra.mxu0 %v835
  %887 = vmatprep.subr.bf16.mxu0 0
  %888 = vmatpush1.bf16.msra.mxu0 %v834
  %889 = vmatprep.subr.bf16.mxu0 0
  %890 = vmatpush1.bf16.msra.mxu0 %v833
  %891 = vmatprep.subr.bf16.mxu0 0
  %892 = vmatpush1.bf16.msra.mxu0 %v832
  %893 = vmatprep.subr.bf16.mxu0 0
  %894 = vmatpush1.bf16.msra.mxu0 %v831
  %895 = vmatprep.subr.bf16.mxu0 0
  %896 = vmatpush2.bf16.msra.mxu0 %v846
  %897 = vmatprep.subr.bf16.mxu0 0
  %898 = vmatpush2.bf16.msra.mxu0 %v845
  %899 = vmatprep.subr.bf16.mxu0 0
  %900 = vmatpush2.bf16.msra.mxu0 %v844
  %901 = vmatprep.subr.bf16.mxu0 0
  %902 = vmatpush2.bf16.msra.mxu0 %v843
  %903 = vmatprep.subr.bf16.mxu0 0
  %904 = vmatpush2.bf16.msra.mxu0 %v842
  %905 = vmatprep.subr.bf16.mxu0 0
  %906 = vmatpush2.bf16.msra.mxu0 %v841
  %907 = vmatprep.subr.bf16.mxu0 0
  %908 = vmatpush2.bf16.msra.mxu0 %v840
  %909 = vmatprep.subr.bf16.mxu0 0
  %910 = vmatpush2.bf16.msra.mxu0 %v839
  %911 = vmatprep.mubr.bf16.mxu0 %v662
  %912 = vmatmul.mubr.bf16.gmra.mxu0 %v650
  %v913 = vpop.f32.mrf.mxu0
  %v914 = vadd.f32 %v734, %v913
  %v915 = vpop.f32.mrf.mxu0
  %v916 = vpop.f32.mrf.mxu0
  %v917 = vadd.f32 %v734, %v916
  %v918 = vpop.f32.mrf.mxu0
  %919 = vmatprep.mubr.bf16.mxu0 %v664
  %920 = vmatmul.mubr.bf16.gmra.mxu0 %v651
  %v921 = vpop.f32.mrf.mxu0
  %v922 = vadd.f32 %v734, %v921
  %v923 = vpop.f32.mrf.mxu0
  %v924 = vpop.f32.mrf.mxu0
  %v925 = vadd.f32 %v734, %v924
  %v926 = vpop.f32.mrf.mxu0
  %927 = vdwg.mxu0
  %928 = vmatprep.subr.bf16.mxu0 0
  %929 = vmatpush1.bf16.msra.mxu0 %v854
  %930 = vmatprep.subr.bf16.mxu0 0
  %931 = vmatpush1.bf16.msra.mxu0 %v853
  %932 = vmatprep.subr.bf16.mxu0 0
  %933 = vmatpush1.bf16.msra.mxu0 %v852
  %934 = vmatprep.subr.bf16.mxu0 0
  %935 = vmatpush1.bf16.msra.mxu0 %v851
  %936 = vmatprep.subr.bf16.mxu0 0
  %937 = vmatpush1.bf16.msra.mxu0 %v850
  %938 = vmatprep.subr.bf16.mxu0 0
  %939 = vmatpush1.bf16.msra.mxu0 %v849
  %940 = vmatprep.subr.bf16.mxu0 0
  %941 = vmatpush1.bf16.msra.mxu0 %v848
  %942 = vmatprep.subr.bf16.mxu0 0
  %943 = vmatpush1.bf16.msra.mxu0 %v847
  %944 = vmatprep.subr.bf16.mxu0 0
  %945 = vmatpush2.bf16.msra.mxu0 0
  %946 = vmatprep.subr.bf16.mxu0 0
  %947 = vmatpush2.bf16.msra.mxu0 0
  %948 = vmatprep.subr.bf16.mxu0 0
  %949 = vmatpush2.bf16.msra.mxu0 0
  %950 = vmatprep.subr.bf16.mxu0 0
  %951 = vmatpush2.bf16.msra.mxu0 0
  %952 = vmatprep.subr.bf16.mxu0 0
  %953 = vmatpush2.bf16.msra.mxu0 0
  %954 = vmatprep.subr.bf16.mxu0 0
  %955 = vmatpush2.bf16.msra.mxu0 0
  %956 = vmatprep.subr.bf16.mxu0 0
  %957 = vmatpush2.bf16.msra.mxu0 0
  %958 = vmatprep.subr.bf16.mxu0 0
  %959 = vmatpush2.bf16.msra.mxu0 0
  %960 = vmatprep.mubr.bf16.mxu0 0
  %961 = vmatmul.mubr.bf16.gmra.mxu0 %v675
  %v962 = vpop.f32.mrf.mxu0
  %v963 = vadd.f32 %v914, %v962
  %v964 = vpop.f32.mrf.mxu0
  %v965 = vpop.f32.mrf.mxu0
  %v966 = vadd.f32 %v917, %v965
  %v967 = vpop.f32.mrf.mxu0
  %968 = vmatprep.mubr.bf16.mxu0 0
  %969 = vmatmul.mubr.bf16.gmra.mxu0 %v677
  %v970 = vpop.f32.mrf.mxu0
  %v971 = vadd.f32 %v922, %v970
  %v972 = vpop.f32.mrf.mxu0
  %v973 = vpop.f32.mrf.mxu0
  %v974 = vadd.f32 %v925, %v973
  %v975 = vpop.f32.mrf.mxu0
  %976 = vdwg.mxu0
  %v977 = vmax.f32 %v963, 0.0
  %v978 = vmax.f32 %v966, 0.0
  %v979 = vmax.f32 %v971, 0.0
  %v980 = vmax.f32 %v974, 0.0
  %v981 = vadd.f32 %v977, %v978
  %v982 = vadd.f32 %v981, %v979
  %v983 = vadd.f32 %v982, %v980
  %v984 = vrot.slane %v983, 4
  %v985 = vadd.f32 %v983, %v984
  %v986 = vrot.slane %v985, 2
  %v987 = vadd.f32 %v985, %v986
  %v988 = vrot.slane %v987, 1
  %v989 = vadd.f32 %v987, %v988
  %v990 = vmul.f32 %v977, %v977
  %v991 = vmul.f32 %v978, %v978
  %v992 = vmul.f32 %v979, %v979
  %v993 = vmul.f32 %v980, %v980
  %v994 = vadd.f32 %v990, %v991
  %v995 = vadd.f32 %v994, %v992
  %v996 = vadd.f32 %v995, %v993
  %v997 = vrot.slane %v996, 4
  %v998 = vadd.f32 %v996, %v997
  %v999 = vrot.slane %v998, 2
  %v1000 = vadd.f32 %v998, %v999
  %v1001 = vrot.slane %v1000, 1
  %v1002 = vadd.f32 %v1000, %v1001
  %v1003 = vsel %vm415, %v989, %v1002
  %1004 = vmatprep.subr.mxu0 0.0
  %1005 = vmatpush1.msra.mxu0 %v42
  %1006 = vmatprep.subr.mxu0 0.0
  %1007 = vmatpush1.msra.mxu0 %v41
  %1008 = vmatprep.subr.mxu0 0.0
  %1009 = vmatpush1.msra.mxu0 %v40
  %1010 = vmatprep.subr.mxu0 0.0
  %1011 = vmatpush1.msra.mxu0 %v39
  %1012 = vmatprep.subr.mxu0 0.0
  %1013 = vmatpush1.msra.mxu0 %v38
  %1014 = vmatprep.subr.mxu0 0.0
  %1015 = vmatpush1.msra.mxu0 %v37
  %1016 = vmatprep.subr.mxu0 0.0
  %1017 = vmatpush1.msra.mxu0 %v36
  %1018 = vmatprep.subr.mxu0 0.0
  %1019 = vmatpush1.msra.mxu0 %v35
  %1020 = vmatprep.subr.mxu0 0.0
  %1021 = vmatpush1.msra.mxu0 %v34
  %1022 = vmatprep.subr.mxu0 0.0
  %1023 = vmatpush1.msra.mxu0 %v33
  %1024 = vmatprep.subr.mxu0 0.0
  %1025 = vmatpush1.msra.mxu0 %v32
  %1026 = vmatprep.subr.mxu0 0.0
  %1027 = vmatpush1.msra.mxu0 %v31
  %1028 = vmatprep.subr.mxu0 0.0
  %1029 = vmatpush1.msra.mxu0 %v30
  %1030 = vmatprep.subr.mxu0 0.0
  %1031 = vmatpush1.msra.mxu0 %v29
  %1032 = vmatprep.subr.mxu0 0.0
  %1033 = vmatpush1.msra.mxu0 %v28
  %1034 = vmatprep.subr.mxu0 0.0
  %1035 = vmatpush1.msra.mxu0 %v27
  %1036 = vmatprep.subr.mxu0 0.0
  %1037 = vmatpush2.msra.mxu0 0.0
  %1038 = vmatprep.subr.mxu0 0.0
  %1039 = vmatpush2.msra.mxu0 0.0
  %1040 = vmatprep.subr.mxu0 0.0
  %1041 = vmatpush2.msra.mxu0 0.0
  %1042 = vmatprep.subr.mxu0 0.0
  %1043 = vmatpush2.msra.mxu0 0.0
  %1044 = vmatprep.subr.mxu0 0.0
  %1045 = vmatpush2.msra.mxu0 0.0
  %1046 = vmatprep.subr.mxu0 0.0
  %1047 = vmatpush2.msra.mxu0 0.0
  %1048 = vmatprep.subr.mxu0 0.0
  %1049 = vmatpush2.msra.mxu0 0.0
  %1050 = vmatprep.subr.mxu0 0.0
  %1051 = vmatpush2.msra.mxu0 0.0
  %1052 = vmatprep.subr.mxu0 0.0
  %1053 = vmatpush2.msra.mxu0 0.0
  %1054 = vmatprep.subr.mxu0 0.0
  %1055 = vmatpush2.msra.mxu0 0.0
  %1056 = vmatprep.subr.mxu0 0.0
  %1057 = vmatpush2.msra.mxu0 0.0
  %1058 = vmatprep.subr.mxu0 0.0
  %1059 = vmatpush2.msra.mxu0 0.0
  %1060 = vmatprep.subr.mxu0 0.0
  %1061 = vmatpush2.msra.mxu0 0.0
  %1062 = vmatprep.subr.mxu0 0.0
  %1063 = vmatpush2.msra.mxu0 0.0
  %1064 = vmatprep.subr.mxu0 0.0
  %1065 = vmatpush2.msra.mxu0 0.0
  %1066 = vmatprep.subr.mxu0 0.0
  %1067 = vmatpush2.msra.mxu0 0.0
  %1068 = vmatprep.mubr.f32.mxu0 0.0
  %1069 = vmatmul.mubr.f32.gmra.mxu0 %v1003
  %v1070 = vpop.f32.mrf.mxu0
  %v1071 = vadd.f32 0.0, %v1070
  %v1072 = vpop.f32.mrf.mxu0
  %1073 = vdwg.mxu0
  %v1074 = vmul.f32 %v1071, 0.001953125
  %v1075 = vmul.f32 %v1074, %v1074
  %v1077 = vrot.slane %v1075, 7
  %v1079 = vsub.f32 %v1074, %v1077
  %v1080 = vmax.f32 %v1079, 0.0
  %v1081 = vadd.f32 %v1080, 1e-05
  %v1082 = vrsqrt.pop %v1081
  %v1084 = vrot.slane %v1082, 1
  %v1086 = vmul.f32 %v729, %v1084
  %v1087 = vmul.f32 %v1074, %v1086
  %v1088 = vsub.f32 %v730, %v1087
  %v1090 = vrot.slane %v1088, 7
  %v1092 = vsel %vm415, %v1086, %v1090
  %v1094 = vsel %vm506, %v1092, 0
  %1096 = vmatprep.subr.mxu0 0.0
  %1097 = vmatpush1.msra.mxu0 0.0
  %1098 = vmatprep.subr.mxu0 0.0
  %1099 = vmatpush1.msra.mxu0 0.0
  %1100 = vmatprep.subr.mxu0 0.0
  %1101 = vmatpush1.msra.mxu0 0.0
  %1102 = vmatprep.subr.mxu0 0.0
  %1103 = vmatpush1.msra.mxu0 0.0
  %1104 = vmatprep.subr.mxu0 0.0
  %1105 = vmatpush1.msra.mxu0 0.0
  %1106 = vmatprep.subr.mxu0 0.0
  %1107 = vmatpush1.msra.mxu0 0.0
  %1108 = vmatprep.subr.mxu0 0.0
  %1109 = vmatpush1.msra.mxu0 0.0
  %1110 = vmatprep.subr.mxu0 0.0
  %1111 = vmatpush1.msra.mxu0 0.0
  %1112 = vmatprep.subr.mxu0 0.0
  %1113 = vmatpush1.msra.mxu0 0.0
  %1114 = vmatprep.subr.mxu0 0.0
  %1115 = vmatpush1.msra.mxu0 0.0
  %1116 = vmatprep.subr.mxu0 0.0
  %1117 = vmatpush1.msra.mxu0 0.0
  %1118 = vmatprep.subr.mxu0 0.0
  %1119 = vmatpush1.msra.mxu0 0.0
  %1120 = vmatprep.subr.mxu0 0.0
  %1121 = vmatpush1.msra.mxu0 0.0
  %1122 = vmatprep.subr.mxu0 0.0
  %1123 = vmatpush1.msra.mxu0 0.0
  %1124 = vmatprep.subr.mxu0 0.0
  %1125 = vmatpush1.msra.mxu0 0.0
  %1126 = vmatprep.subr.mxu0 0.0
  %1127 = vmatpush1.msra.mxu0 %v43
  %1128 = vmatprep.subr.mxu0 0.0
  %1129 = vmatpush2.msra.mxu0 0.0
  %1130 = vmatprep.subr.mxu0 0.0
  %1131 = vmatpush2.msra.mxu0 0.0
  %1132 = vmatprep.subr.mxu0 0.0
  %1133 = vmatpush2.msra.mxu0 0.0
  %1134 = vmatprep.subr.mxu0 0.0
  %1135 = vmatpush2.msra.mxu0 0.0
  %1136 = vmatprep.subr.mxu0 0.0
  %1137 = vmatpush2.msra.mxu0 0.0
  %1138 = vmatprep.subr.mxu0 0.0
  %1139 = vmatpush2.msra.mxu0 0.0
  %1140 = vmatprep.subr.mxu0 0.0
  %1141 = vmatpush2.msra.mxu0 0.0
  %1142 = vmatprep.subr.mxu0 0.0
  %1143 = vmatpush2.msra.mxu0 0.0
  %1144 = vmatprep.subr.mxu0 0.0
  %1145 = vmatpush2.msra.mxu0 0.0
  %1146 = vmatprep.subr.mxu0 0.0
  %1147 = vmatpush2.msra.mxu0 0.0
  %1148 = vmatprep.subr.mxu0 0.0
  %1149 = vmatpush2.msra.mxu0 0.0
  %1150 = vmatprep.subr.mxu0 0.0
  %1151 = vmatpush2.msra.mxu0 0.0
  %1152 = vmatprep.subr.mxu0 0.0
  %1153 = vmatpush2.msra.mxu0 0.0
  %1154 = vmatprep.subr.mxu0 0.0
  %1155 = vmatpush2.msra.mxu0 0.0
  %1156 = vmatprep.subr.mxu0 0.0
  %1157 = vmatpush2.msra.mxu0 0.0
  %1158 = vmatprep.subr.mxu0 0.0
  %1159 = vmatpush2.msra.mxu0 0.0
  %1160 = vmatprep.mubr.f32.mxu0 0.0
  %1161 = vmatmul.mubr.f32.gmra.mxu0 %v1094
  %v1162 = vpop.f32.mrf.mxu0
  %v1163 = vadd.f32 0.0, %v1162
  %v1164 = vpop.f32.mrf.mxu0
  %1165 = vdwg.mxu0
  %v1166 = vlaneseq
  %v1167 = vshrl.u32 %v1166, 7
  %v1168 = vsub.s32 0, %v1167
  %v1169 = vrot.slane %v1163, %v1168
  %v1170 = vmul.f32 %v977, %v1169
  %v1171 = vmul.f32 %v978, %v1169
  %v1172 = vmul.f32 %v979, %v1169
  %v1173 = vmul.f32 %v980, %v1169
  %v1174 = vlaneseq
  %v1175 = vshrl.u32 %v1174, 7
  %v1176 = vsub.s32 1, %v1175
  %v1177 = vrot.slane %v1163, %v1176
  %v1178 = vadd.f32 %v1170, %v1177
  %v1179 = vadd.f32 %v1171, %v1177
  %v1180 = vadd.f32 %v1172, %v1177
  %v1181 = vadd.f32 %v1173, %v1177
  %1182 = vst [vmem:[#allocation3] sm:$0x1] 0
  %1183 = vst [vmem:[#allocation3 + $0x10] sm:$0x6] 0
  %v1184 = vpack.c.bf16 %v1179, %v1178
  %v1185 = vpack.c.bf16 %v1181, %v1180
  %v1188 = vunpack.c.l.b16 %v1184
  %v1189 = vunpack.c.h.b16 %v1184
  %v1190 = vunpack.c.l.b16 %v1185
  %v1191 = vunpack.c.h.b16 %v1185
  %v1192 = vpack.c.b16 %v1188, %v1188
  %v1193 = vpack.c.b16 %v1189, %v1189
  %v1194 = vpack.c.b16 %v1190, %v1190
  %v1195 = vpack.c.b16 %v1191, %v1191
  %v1196 = vrot.slane %v1192, 7
  %v1197 = vrot.slane %v1196, 4
  %v1198 = vrot.slane %v1193, 7
  %v1199 = vsel %vm612, %v1197, %v1198
  %v1200 = vrot.slane %v1198, 4
  %v1201 = vrot.slane %v1194, 7
  %v1202 = vsel %vm612, %v1200, %v1201
  %v1203 = vrot.slane %v1201, 4
  %v1204 = vrot.slane %v1195, 7
  %v1205 = vsel %vm612, %v1203, %v1204
  %v1206 = vrot.slane %v1204, 4
  %1212 = vst [vmem:[#allocation3] sm:$0xe] %v1196
  %1213 = vst [vmem:[#allocation3 + $0x4] sm:$0xf] %v1199
  %1214 = vst [vmem:[#allocation3 + $0x8] sm:$0xf] %v1202
  %1215 = vst [vmem:[#allocation3 + $0xc] sm:$0xf] %v1205
  %1216 = vst [vmem:[#allocation3 + $0x10] sm:$0x1] %v1206
  %v1217 = vld [vmem:[#allocation3] sm:$0xf]
  %v1218 = vld [vmem:[#allocation3 + $0x4] sm:$0xf]
  %v1219 = vld [vmem:[#allocation3 + $0x8] sm:$0xf]
  %v1220 = vld [vmem:[#allocation3 + $0xc] sm:$0xf]
  %v1226 = vunpack.c.l.s4 1966171168
  %v1227 = vunpack.c.0.s8 %v1226
  %v1228 = vlaneseq
  %v1229 = vshrl.u32 %v1228, 7
  %v1230 = vsub.s32 %v1227, %v1229
  %v1231 = vrot.slane %v1217, %v1230
  %v1233 = vunpack.c.l.s4 1966171168
  %v1234 = vunpack.c.0.s8 %v1233
  %v1235 = vlaneseq
  %v1236 = vshrl.u32 %v1235, 7
  %v1237 = vsub.s32 %v1234, %v1236
  %v1238 = vrot.slane %v1231, %v1237
  %v1239 = vcombine.high %v1238, %v1238
  %v1241 = vunpack.c.l.s4 1966171168
  %v1242 = vunpack.c.0.s8 %v1241
  %v1243 = vlaneseq
  %v1244 = vshrl.u32 %v1243, 7
  %v1245 = vsub.s32 %v1242, %v1244
  %v1246 = vrot.slane %v1218, %v1245
  %v1248 = vunpack.c.l.s4 1966171168
  %v1249 = vunpack.c.0.s8 %v1248
  %v1250 = vlaneseq
  %v1251 = vshrl.u32 %v1250, 7
  %v1252 = vsub.s32 %v1249, %v1251
  %v1253 = vrot.slane %v1246, %v1252
  %v1254 = vcombine.high %v1253, %v1253
  %v1256 = vunpack.c.l.s4 1966171168
  %v1257 = vunpack.c.0.s8 %v1256
  %v1258 = vlaneseq
  %v1259 = vshrl.u32 %v1258, 7
  %v1260 = vsub.s32 %v1257, %v1259
  %v1261 = vrot.slane %v1219, %v1260
  %v1263 = vunpack.c.l.s4 1966171168
  %v1264 = vunpack.c.0.s8 %v1263
  %v1265 = vlaneseq
  %v1266 = vshrl.u32 %v1265, 7
  %v1267 = vsub.s32 %v1264, %v1266
  %v1268 = vrot.slane %v1261, %v1267
  %v1269 = vcombine.high %v1268, %v1268
  %v1271 = vunpack.c.l.s4 1966171168
  %v1272 = vunpack.c.0.s8 %v1271
  %v1273 = vlaneseq
  %v1274 = vshrl.u32 %v1273, 7
  %v1275 = vsub.s32 %v1272, %v1274
  %v1276 = vrot.slane %v1220, %v1275
  %v1278 = vunpack.c.l.s4 1966171168
  %v1279 = vunpack.c.0.s8 %v1278
  %v1280 = vlaneseq
  %v1281 = vshrl.u32 %v1280, 7
  %v1282 = vsub.s32 %v1279, %v1281
  %v1283 = vrot.slane %v1276, %v1282
  %v1284 = vcombine.high %v1283, %v1283
  %v1285 = vld [vmem:[#allocation3] sm:$0xe]
  %v1288 = vunpack.c.l.s4 1966171168
  %v1289 = vunpack.c.0.s8 %v1288
  %v1290 = vlaneseq
  %v1291 = vshrl.u32 %v1290, 7
  %v1292 = vsub.s32 %v1289, %v1291
  %v1293 = vrot.slane %v1285, %v1292
  %v1294 = vcombine.high %v1293, %v1293
  %v1296 = vunpack.c.l.s4 1966171168
  %v1297 = vunpack.c.0.s8 %v1296
  %v1298 = vlaneseq
  %v1299 = vshrl.u32 %v1298, 7
  %v1300 = vsub.s32 %v1297, %v1299
  %v1301 = vrot.slane %v1294, %v1300
  %v1302 = vcombine.high %v1301, %v1301
  %v1303 = vcombine.high %v1246, %v1246
  %v1305 = vunpack.c.l.s4 1966171168
  %v1306 = vunpack.c.0.s8 %v1305
  %v1307 = vlaneseq
  %v1308 = vshrl.u32 %v1307, 7
  %v1309 = vsub.s32 %v1306, %v1308
  %v1310 = vrot.slane %v1303, %v1309
  %v1311 = vcombine.high %v1310, %v1310
  %v1312 = vcombine.high %v1261, %v1261
  %v1314 = vunpack.c.l.s4 1966171168
  %v1315 = vunpack.c.0.s8 %v1314
  %v1316 = vlaneseq
  %v1317 = vshrl.u32 %v1316, 7
  %v1318 = vsub.s32 %v1315, %v1317
  %v1319 = vrot.slane %v1312, %v1318
  %v1320 = vcombine.high %v1319, %v1319
  %v1321 = vcombine.high %v1276, %v1276
  %v1323 = vunpack.c.l.s4 1966171168
  %v1324 = vunpack.c.0.s8 %v1323
  %v1325 = vlaneseq
  %v1326 = vshrl.u32 %v1325, 7
  %v1327 = vsub.s32 %v1324, %v1326
  %v1328 = vrot.slane %v1321, %v1327
  %v1329 = vcombine.high %v1328, %v1328
  %v1330 = vld [vmem:[#allocation3] sm:$0xc]
  %v1331 = vld [vmem:[#allocation3 + $0x10] sm:$0x3]
  %v1335 = vunpack.c.l.s4 1966171168
  %v1336 = vunpack.c.0.s8 %v1335
  %v1337 = vlaneseq
  %v1338 = vshrl.u32 %v1337, 7
  %v1339 = vsub.s32 %v1336, %v1338
  %v1340 = vrot.slane %v1330, %v1339
  %v1342 = vunpack.c.l.s4 1966171168
  %v1343 = vunpack.c.0.s8 %v1342
  %v1344 = vlaneseq
  %v1345 = vshrl.u32 %v1344, 7
  %v1346 = vsub.s32 %v1343, %v1345
  %v1347 = vrot.slane %v1340, %v1346
  %v1348 = vcombine.high %v1347, %v1347
  %v1350 = vunpack.c.l.s4 1966171168
  %v1351 = vunpack.c.0.s8 %v1350
  %v1352 = vlaneseq
  %v1353 = vshrl.u32 %v1352, 7
  %v1354 = vsub.s32 %v1351, %v1353
  %v1355 = vrot.slane %v1331, %v1354
  %v1357 = vunpack.c.l.s4 1966171168
  %v1358 = vunpack.c.0.s8 %v1357
  %v1359 = vlaneseq
  %v1360 = vshrl.u32 %v1359, 7
  %v1361 = vsub.s32 %v1358, %v1360
  %v1362 = vrot.slane %v1355, %v1361
  %v1363 = vld [vmem:[#allocation3] sm:$0x8]
  %v1364 = vld [vmem:[#allocation3 + $0x10] sm:$0x7]
  %v1368 = vunpack.c.l.s4 1966171168
  %v1369 = vunpack.c.0.s8 %v1368
  %v1370 = vlaneseq
  %v1371 = vshrl.u32 %v1370, 7
  %v1372 = vsub.s32 %v1369, %v1371
  %v1373 = vrot.slane %v1363, %v1372
  %v1374 = vcombine.high %v1373, %v1373
  %v1376 = vunpack.c.l.s4 1966171168
  %v1377 = vunpack.c.0.s8 %v1376
  %v1378 = vlaneseq
  %v1379 = vshrl.u32 %v1378, 7
  %v1380 = vsub.s32 %v1377, %v1379
  %v1381 = vrot.slane %v1374, %v1380
  %v1382 = vcombine.high %v1381, %v1381
  %v1384 = vunpack.c.l.s4 1966171168
  %v1385 = vunpack.c.0.s8 %v1384
  %v1386 = vlaneseq
  %v1387 = vshrl.u32 %v1386, 7
  %v1388 = vsub.s32 %v1385, %v1387
  %v1389 = vrot.slane %v1364, %v1388
  %v1390 = vcombine.high %v1389, %v1389
  %v1392 = vunpack.c.l.s4 1966171168
  %v1393 = vunpack.c.0.s8 %v1392
  %v1394 = vlaneseq
  %v1395 = vshrl.u32 %v1394, 7
  %v1396 = vsub.s32 %v1393, %v1395
  %v1397 = vrot.slane %v1390, %v1396
  %v1398 = vcombine.low %v1238, %v1239
  %v1399 = vcombine.low %v1253, %v1254
  %v1400 = vcombine.low %v1268, %v1269
  %v1401 = vcombine.low %v1283, %v1284
  %v1403 = vunpack.c.l.s4 1966171168
  %v1404 = vunpack.c.0.s8 %v1403
  %v1405 = vlaneseq
  %v1406 = vshrl.u32 %v1405, 7
  %v1407 = vsub.s32 %v1404, %v1406
  %v1408 = vrot.slane %v1398, %v1407
  %v1410 = vunpack.c.l.s4 1966171168
  %v1411 = vunpack.c.0.s8 %v1410
  %v1412 = vlaneseq
  %v1413 = vshrl.u32 %v1412, 7
  %v1414 = vsub.s32 %v1411, %v1413
  %v1415 = vrot.slane %v1399, %v1414
  %v1417 = vunpack.c.l.s4 1966171168
  %v1418 = vunpack.c.0.s8 %v1417
  %v1419 = vlaneseq
  %v1420 = vshrl.u32 %v1419, 7
  %v1421 = vsub.s32 %v1418, %v1420
  %v1422 = vrot.slane %v1400, %v1421
  %v1424 = vunpack.c.l.s4 1966171168
  %v1425 = vunpack.c.0.s8 %v1424
  %v1426 = vlaneseq
  %v1427 = vshrl.u32 %v1426, 7
  %v1428 = vsub.s32 %v1425, %v1427
  %v1429 = vrot.slane %v1401, %v1428
  %v1430 = vcombine.low %v1408, %v1415
  %v1431 = vcombine.low %v1422, %v1429
  %v1433 = vunpack.c.l.s4 1966171168
  %v1434 = vunpack.c.0.s8 %v1433
  %v1435 = vlaneseq
  %v1436 = vshrl.u32 %v1435, 7
  %v1437 = vsub.s32 %v1434, %v1436
  %v1438 = vrot.slane %v1430, %v1437
  %v1440 = vunpack.c.l.s4 1966171168
  %v1441 = vunpack.c.0.s8 %v1440
  %v1442 = vlaneseq
  %v1443 = vshrl.u32 %v1442, 7
  %v1444 = vsub.s32 %v1441, %v1443
  %v1445 = vrot.slane %v1431, %v1444
  %v1446 = vcombine.low %v1438, %v1445
  %v1448 = vcombine.low %v1301, %v1302
  %v1449 = vcombine.low %v1310, %v1311
  %v1450 = vcombine.low %v1319, %v1320
  %v1451 = vcombine.low %v1328, %v1329
  %v1453 = vunpack.c.l.s4 1966171168
  %v1454 = vunpack.c.0.s8 %v1453
  %v1455 = vlaneseq
  %v1456 = vshrl.u32 %v1455, 7
  %v1457 = vsub.s32 %v1454, %v1456
  %v1458 = vrot.slane %v1448, %v1457
  %v1460 = vunpack.c.l.s4 1966171168
  %v1461 = vunpack.c.0.s8 %v1460
  %v1462 = vlaneseq
  %v1463 = vshrl.u32 %v1462, 7
  %v1464 = vsub.s32 %v1461, %v1463
  %v1465 = vrot.slane %v1449, %v1464
  %v1467 = vunpack.c.l.s4 1966171168
  %v1468 = vunpack.c.0.s8 %v1467
  %v1469 = vlaneseq
  %v1470 = vshrl.u32 %v1469, 7
  %v1471 = vsub.s32 %v1468, %v1470
  %v1472 = vrot.slane %v1450, %v1471
  %v1474 = vunpack.c.l.s4 1966171168
  %v1475 = vunpack.c.0.s8 %v1474
  %v1476 = vlaneseq
  %v1477 = vshrl.u32 %v1476, 7
  %v1478 = vsub.s32 %v1475, %v1477
  %v1479 = vrot.slane %v1451, %v1478
  %v1480 = vcombine.low %v1458, %v1465
  %v1481 = vcombine.low %v1472, %v1479
  %v1483 = vunpack.c.l.s4 1966171168
  %v1484 = vunpack.c.0.s8 %v1483
  %v1485 = vlaneseq
  %v1486 = vshrl.u32 %v1485, 7
  %v1487 = vsub.s32 %v1484, %v1486
  %v1488 = vrot.slane %v1480, %v1487
  %v1490 = vunpack.c.l.s4 1966171168
  %v1491 = vunpack.c.0.s8 %v1490
  %v1492 = vlaneseq
  %v1493 = vshrl.u32 %v1492, 7
  %v1494 = vsub.s32 %v1491, %v1493
  %v1495 = vrot.slane %v1481, %v1494
  %v1496 = vcombine.low %v1488, %v1495
  %v1498 = vcombine.low %v1348, %v1253
  %v1499 = vcombine.low %v1254, %v1268
  %v1500 = vcombine.low %v1269, %v1283
  %v1501 = vcombine.low %v1284, %v1362
  %v1503 = vunpack.c.l.s4 1966171168
  %v1504 = vunpack.c.0.s8 %v1503
  %v1505 = vlaneseq
  %v1506 = vshrl.u32 %v1505, 7
  %v1507 = vsub.s32 %v1504, %v1506
  %v1508 = vrot.slane %v1498, %v1507
  %v1510 = vunpack.c.l.s4 1966171168
  %v1511 = vunpack.c.0.s8 %v1510
  %v1512 = vlaneseq
  %v1513 = vshrl.u32 %v1512, 7
  %v1514 = vsub.s32 %v1511, %v1513
  %v1515 = vrot.slane %v1499, %v1514
  %v1517 = vunpack.c.l.s4 1966171168
  %v1518 = vunpack.c.0.s8 %v1517
  %v1519 = vlaneseq
  %v1520 = vshrl.u32 %v1519, 7
  %v1521 = vsub.s32 %v1518, %v1520
  %v1522 = vrot.slane %v1500, %v1521
  %v1524 = vunpack.c.l.s4 1966171168
  %v1525 = vunpack.c.0.s8 %v1524
  %v1526 = vlaneseq
  %v1527 = vshrl.u32 %v1526, 7
  %v1528 = vsub.s32 %v1525, %v1527
  %v1529 = vrot.slane %v1501, %v1528
  %v1530 = vcombine.low %v1508, %v1515
  %v1531 = vcombine.low %v1522, %v1529
  %v1533 = vunpack.c.l.s4 1966171168
  %v1534 = vunpack.c.0.s8 %v1533
  %v1535 = vlaneseq
  %v1536 = vshrl.u32 %v1535, 7
  %v1537 = vsub.s32 %v1534, %v1536
  %v1538 = vrot.slane %v1530, %v1537
  %v1540 = vunpack.c.l.s4 1966171168
  %v1541 = vunpack.c.0.s8 %v1540
  %v1542 = vlaneseq
  %v1543 = vshrl.u32 %v1542, 7
  %v1544 = vsub.s32 %v1541, %v1543
  %v1545 = vrot.slane %v1531, %v1544
  %v1546 = vcombine.low %v1538, %v1545
  %v1548 = vcombine.low %v1382, %v1310
  %v1549 = vcombine.low %v1311, %v1319
  %v1550 = vcombine.low %v1320, %v1328
  %v1551 = vcombine.low %v1329, %v1397
  %v1553 = vunpack.c.l.s4 1966171168
  %v1554 = vunpack.c.0.s8 %v1553
  %v1555 = vlaneseq
  %v1556 = vshrl.u32 %v1555, 7
  %v1557 = vsub.s32 %v1554, %v1556
  %v1558 = vrot.slane %v1548, %v1557
  %v1560 = vunpack.c.l.s4 1966171168
  %v1561 = vunpack.c.0.s8 %v1560
  %v1562 = vlaneseq
  %v1563 = vshrl.u32 %v1562, 7
  %v1564 = vsub.s32 %v1561, %v1563
  %v1565 = vrot.slane %v1549, %v1564
  %v1567 = vunpack.c.l.s4 1966171168
  %v1568 = vunpack.c.0.s8 %v1567
  %v1569 = vlaneseq
  %v1570 = vshrl.u32 %v1569, 7
  %v1571 = vsub.s32 %v1568, %v1570
  %v1572 = vrot.slane %v1550, %v1571
  %v1574 = vunpack.c.l.s4 1966171168
  %v1575 = vunpack.c.0.s8 %v1574
  %v1576 = vlaneseq
  %v1577 = vshrl.u32 %v1576, 7
  %v1578 = vsub.s32 %v1575, %v1577
  %v1579 = vrot.slane %v1551, %v1578
  %v1580 = vcombine.low %v1558, %v1565
  %v1581 = vcombine.low %v1572, %v1579
  %v1583 = vunpack.c.l.s4 1966171168
  %v1584 = vunpack.c.0.s8 %v1583
  %v1585 = vlaneseq
  %v1586 = vshrl.u32 %v1585, 7
  %v1587 = vsub.s32 %v1584, %v1586
  %v1588 = vrot.slane %v1580, %v1587
  %v1590 = vunpack.c.l.s4 1966171168
  %v1591 = vunpack.c.0.s8 %v1590
  %v1592 = vlaneseq
  %v1593 = vshrl.u32 %v1592, 7
  %v1594 = vsub.s32 %v1591, %v1593
  %v1595 = vrot.slane %v1581, %v1594
  %v1596 = vcombine.low %v1588, %v1595
  %v1598 = vld [vmem:[%s2] sm:$0xf]
  %v1599 = vld [vmem:[%s2 + $0x4] sm:$0xf]
  %v1600 = vld [vmem:[%s2 + $0x8] sm:$0xf]
  %v1601 = vld [vmem:[%s2 + $0xc] sm:$0xf]
  %v1602 = vld [vmem:[%s2 + $0x10] sm:$0xf]
  %v1603 = vld [vmem:[%s2 + $0x14] sm:$0xf]
  %v1604 = vld [vmem:[%s2 + $0x18] sm:$0xf]
  %v1605 = vld [vmem:[%s2 + $0x1c] sm:$0xf]
  %v1606 = vld [vmem:[%s2 + $0x20] sm:$0xf]
  %v1607 = vld [vmem:[%s2 + $0x24] sm:$0xf]
  %v1608 = vld [vmem:[%s2 + $0x28] sm:$0xf]
  %v1609 = vld [vmem:[%s2 + $0x2c] sm:$0xf]
  %v1610 = vld [vmem:[%s2 + $0x30] sm:$0xf]
  %v1611 = vld [vmem:[%s2 + $0x34] sm:$0xf]
  %v1612 = vld [vmem:[%s2 + $0x38] sm:$0xf]
  %v1613 = vld [vmem:[%s2 + $0x3c] sm:$0xf]
  %v1614 = vld [vmem:[%s2 + $0x40] sm:$0xf]
  %v1615 = vld [vmem:[%s2 + $0x44] sm:$0xf]
  %v1616 = vld [vmem:[%s2 + $0x48] sm:$0xf]
  %v1617 = vld [vmem:[%s2 + $0x4c] sm:$0xf]
  %v1618 = vld [vmem:[%s2 + $0x50] sm:$0xf]
  %v1619 = vld [vmem:[%s2 + $0x54] sm:$0xf]
  %v1620 = vld [vmem:[%s2 + $0x58] sm:$0xf]
  %v1621 = vld [vmem:[%s2 + $0x5c] sm:$0xf]
  %v1622 = vld [vmem:[%s2 + $0x60] sm:$0xf]
  %v1623 = vld [vmem:[%s2 + $0x64] sm:$0xf]
  %v1624 = vld [vmem:[%s2 + $0x68] sm:$0xf]
  %v1625 = vld [vmem:[%s2 + $0x6c] sm:$0xf]
  %v1626 = vld [vmem:[%s2 + $0x70] sm:$0xf]
  %v1627 = vld [vmem:[%s2 + $0x74] sm:$0xf]
  %v1628 = vld [vmem:[%s2 + $0x78] sm:$0xf]
  %v1629 = vld [vmem:[%s2 + $0x7c] sm:$0xf]
  %v1630 = vld [vmem:[%s2 + $0x80] sm:$0xf]
  %v1631 = vld [vmem:[%s2 + $0x84] sm:$0xf]
  %v1632 = vld [vmem:[%s2 + $0x88] sm:$0xf]
  %v1633 = vld [vmem:[%s2 + $0x8c] sm:$0xf]
  %v1634 = vld [vmem:[%s2 + $0x90] sm:$0xf]
  %v1635 = vld [vmem:[%s2 + $0x94] sm:$0xf]
  %v1636 = vld [vmem:[%s2 + $0x98] sm:$0xf]
  %v1637 = vld [vmem:[%s2 + $0x9c] sm:$0xf]
  %v1638 = vld [vmem:[%s2 + $0xa0] sm:$0xf]
  %v1639 = vld [vmem:[%s2 + $0xa4] sm:$0xf]
  %v1640 = vld [vmem:[%s2 + $0xa8] sm:$0xf]
  %v1641 = vld [vmem:[%s2 + $0xac] sm:$0xf]
  %v1642 = vld [vmem:[%s2 + $0xb0] sm:$0xf]
  %v1643 = vld [vmem:[%s2 + $0xb4] sm:$0xf]
  %v1644 = vld [vmem:[%s2 + $0xb8] sm:$0xf]
  %v1645 = vld [vmem:[%s2 + $0xbc] sm:$0xf]
  %v1646 = vld [vmem:[%s2 + $0xc0] sm:$0xf]
  %v1647 = vld [vmem:[%s2 + $0xc4] sm:$0xf]
  %v1648 = vld [vmem:[%s2 + $0xc8] sm:$0xf]
  %v1649 = vld [vmem:[%s2 + $0xcc] sm:$0xf]
  %v1650 = vld [vmem:[%s2 + $0xd0] sm:$0xf]
  %v1651 = vld [vmem:[%s2 + $0xd4] sm:$0xf]
  %v1652 = vld [vmem:[%s2 + $0xd8] sm:$0xf]
  %v1653 = vld [vmem:[%s2 + $0xdc] sm:$0xf]
  %v1654 = vld [vmem:[%s2 + $0xe0] sm:$0xf]
  %v1655 = vld [vmem:[%s2 + $0xe4] sm:$0xf]
  %v1656 = vld [vmem:[%s2 + $0xe8] sm:$0xf]
  %v1657 = vld [vmem:[%s2 + $0xec] sm:$0xf]
  %v1658 = vld [vmem:[%s2 + $0xf0] sm:$0xf]
  %v1659 = vld [vmem:[%s2 + $0xf4] sm:$0xf]
  %v1660 = vld [vmem:[%s2 + $0xf8] sm:$0xf]
  %v1661 = vld [vmem:[%s2 + $0xfc] sm:$0xf]
  %v1662 = vld [vmem:[%s3 + $0x2] sm:$0x1]
  %v1663 = vlaneseq
  %v1664 = vshrl.u32 %v1663, 7
  %v1665 = vsub.s32 0, %v1664
  %v1666 = vrot.slane %v1662, %v1665
  %v1731 = vunpack.c.l.b16 %v1598
  %v1732 = vunpack.c.l.b16 %v1599
  %v1733 = vunpack.c.l.b16 %v1600
  %v1734 = vunpack.c.l.b16 %v1601
  %v1735 = vunpack.c.l.b16 %v1602
  %v1736 = vunpack.c.l.b16 %v1603
  %v1737 = vunpack.c.l.b16 %v1604
  %v1738 = vunpack.c.l.b16 %v1605
  %v1739 = vunpack.c.l.b16 %v1606
  %v1740 = vunpack.c.l.b16 %v1607
  %v1741 = vunpack.c.l.b16 %v1608
  %v1742 = vunpack.c.l.b16 %v1609
  %v1743 = vunpack.c.l.b16 %v1610
  %v1744 = vunpack.c.l.b16 %v1611
  %v1745 = vunpack.c.l.b16 %v1612
  %v1746 = vunpack.c.l.b16 %v1613
  %v1747 = vunpack.c.l.b16 %v1614
  %v1748 = vunpack.c.l.b16 %v1615
  %v1749 = vunpack.c.l.b16 %v1616
  %v1750 = vunpack.c.l.b16 %v1617
  %v1751 = vunpack.c.l.b16 %v1618
  %v1752 = vunpack.c.l.b16 %v1619
  %v1753 = vunpack.c.l.b16 %v1620
  %v1754 = vunpack.c.l.b16 %v1621
  %v1755 = vunpack.c.l.b16 %v1622
  %v1756 = vunpack.c.l.b16 %v1623
  %v1757 = vunpack.c.l.b16 %v1624
  %v1758 = vunpack.c.l.b16 %v1625
  %v1759 = vunpack.c.l.b16 %v1626
  %v1760 = vunpack.c.l.b16 %v1627
  %v1761 = vunpack.c.l.b16 %v1628
  %v1762 = vunpack.c.l.b16 %v1629
  %v1763 = vunpack.c.l.b16 %v1630
  %v1764 = vunpack.c.l.b16 %v1631
  %v1765 = vunpack.c.l.b16 %v1632
  %v1766 = vunpack.c.l.b16 %v1633
  %v1767 = vunpack.c.l.b16 %v1634
  %v1768 = vunpack.c.l.b16 %v1635
  %v1769 = vunpack.c.l.b16 %v1636
  %v1770 = vunpack.c.l.b16 %v1637
  %v1771 = vunpack.c.l.b16 %v1638
  %v1772 = vunpack.c.l.b16 %v1639
  %v1773 = vunpack.c.l.b16 %v1640
  %v1774 = vunpack.c.l.b16 %v1641
  %v1775 = vunpack.c.l.b16 %v1642
  %v1776 = vunpack.c.l.b16 %v1643
  %v1777 = vunpack.c.l.b16 %v1644
  %v1778 = vunpack.c.l.b16 %v1645
  %v1779 = vunpack.c.l.b16 %v1646
  %v1780 = vunpack.c.l.b16 %v1647
  %v1781 = vunpack.c.l.b16 %v1648
  %v1782 = vunpack.c.l.b16 %v1649
  %v1783 = vunpack.c.l.b16 %v1650
  %v1784 = vunpack.c.l.b16 %v1651
  %v1785 = vunpack.c.l.b16 %v1652
  %v1786 = vunpack.c.l.b16 %v1653
  %v1787 = vunpack.c.l.b16 %v1654
  %v1788 = vunpack.c.l.b16 %v1655
  %v1789 = vunpack.c.l.b16 %v1656
  %v1790 = vunpack.c.l.b16 %v1657
  %v1791 = vunpack.c.l.b16 %v1658
  %v1792 = vunpack.c.l.b16 %v1659
  %v1793 = vunpack.c.l.b16 %v1660
  %v1794 = vunpack.c.l.b16 %v1661
  %v1795 = vpack.c.b16 %v1732, %v1731
  %v1796 = vpack.c.b16 %v1734, %v1733
  %v1797 = vpack.c.b16 %v1736, %v1735
  %v1798 = vpack.c.b16 %v1738, %v1737
  %v1799 = vpack.c.b16 %v1740, %v1739
  %v1800 = vpack.c.b16 %v1742, %v1741
  %v1801 = vpack.c.b16 %v1744, %v1743
  %v1802 = vpack.c.b16 %v1746, %v1745
  %v1803 = vpack.c.b16 %v1748, %v1747
  %v1804 = vpack.c.b16 %v1750, %v1749
  %v1805 = vpack.c.b16 %v1752, %v1751
  %v1806 = vpack.c.b16 %v1754, %v1753
  %v1807 = vpack.c.b16 %v1756, %v1755
  %v1808 = vpack.c.b16 %v1758, %v1757
  %v1809 = vpack.c.b16 %v1760, %v1759
  %v1810 = vpack.c.b16 %v1762, %v1761
  %v1811 = vpack.c.b16 %v1764, %v1763
  %v1812 = vpack.c.b16 %v1766, %v1765
  %v1813 = vpack.c.b16 %v1768, %v1767
  %v1814 = vpack.c.b16 %v1770, %v1769
  %v1815 = vpack.c.b16 %v1772, %v1771
  %v1816 = vpack.c.b16 %v1774, %v1773
  %v1817 = vpack.c.b16 %v1776, %v1775
  %v1818 = vpack.c.b16 %v1778, %v1777
  %v1819 = vpack.c.b16 %v1780, %v1779
  %v1820 = vpack.c.b16 %v1782, %v1781
  %v1821 = vpack.c.b16 %v1784, %v1783
  %v1822 = vpack.c.b16 %v1786, %v1785
  %v1823 = vpack.c.b16 %v1788, %v1787
  %v1824 = vpack.c.b16 %v1790, %v1789
  %v1825 = vpack.c.b16 %v1792, %v1791
  %v1826 = vpack.c.b16 %v1794, %v1793
  %1859 = vmatprep.subr.bf16.mxu0 0
  %1860 = vmatpush1.bf16.msra.mxu0 %v1802
  %1861 = vmatprep.subr.bf16.mxu0 0
  %1862 = vmatpush1.bf16.msra.mxu0 %v1801
  %1863 = vmatprep.subr.bf16.mxu0 0
  %1864 = vmatpush1.bf16.msra.mxu0 %v1800
  %1865 = vmatprep.subr.bf16.mxu0 0
  %1866 = vmatpush1.bf16.msra.mxu0 %v1799
  %1867 = vmatprep.subr.bf16.mxu0 0
  %1868 = vmatpush1.bf16.msra.mxu0 %v1798
  %1869 = vmatprep.subr.bf16.mxu0 0
  %1870 = vmatpush1.bf16.msra.mxu0 %v1797
  %1871 = vmatprep.subr.bf16.mxu0 0
  %1872 = vmatpush1.bf16.msra.mxu0 %v1796
  %1873 = vmatprep.subr.bf16.mxu0 0
  %1874 = vmatpush1.bf16.msra.mxu0 %v1795
  %1875 = vmatprep.subr.bf16.mxu0 0
  %1876 = vmatpush2.bf16.msra.mxu0 %v1810
  %1877 = vmatprep.subr.bf16.mxu0 0
  %1878 = vmatpush2.bf16.msra.mxu0 %v1809
  %1879 = vmatprep.subr.bf16.mxu0 0
  %1880 = vmatpush2.bf16.msra.mxu0 %v1808
  %1881 = vmatprep.subr.bf16.mxu0 0
  %1882 = vmatpush2.bf16.msra.mxu0 %v1807
  %1883 = vmatprep.subr.bf16.mxu0 0
  %1884 = vmatpush2.bf16.msra.mxu0 %v1806
  %1885 = vmatprep.subr.bf16.mxu0 0
  %1886 = vmatpush2.bf16.msra.mxu0 %v1805
  %1887 = vmatprep.subr.bf16.mxu0 0
  %1888 = vmatpush2.bf16.msra.mxu0 %v1804
  %1889 = vmatprep.subr.bf16.mxu0 0
  %1890 = vmatpush2.bf16.msra.mxu0 %v1803
  %1891 = vmatprep.mubr.bf16.mxu0 %v1496
  %1892 = vmatmul.mubr.bf16.gmra.mxu0 %v1446
  %v1893 = vpop.f32.mrf.mxu0
  %v1894 = vadd.f32 %v1666, %v1893
  %v1895 = vpop.f32.mrf.mxu0
  %v1896 = vpop.f32.mrf.mxu0
  %v1897 = vadd.f32 %v1666, %v1896
  %v1898 = vpop.f32.mrf.mxu0
  %1899 = vdwg.mxu0
  %1900 = vmatprep.subr.bf16.mxu0 0
  %1901 = vmatpush1.bf16.msra.mxu0 %v1818
  %1902 = vmatprep.subr.bf16.mxu0 0
  %1903 = vmatpush1.bf16.msra.mxu0 %v1817
  %1904 = vmatprep.subr.bf16.mxu0 0
  %1905 = vmatpush1.bf16.msra.mxu0 %v1816
  %1906 = vmatprep.subr.bf16.mxu0 0
  %1907 = vmatpush1.bf16.msra.mxu0 %v1815
  %1908 = vmatprep.subr.bf16.mxu0 0
  %1909 = vmatpush1.bf16.msra.mxu0 %v1814
  %1910 = vmatprep.subr.bf16.mxu0 0
  %1911 = vmatpush1.bf16.msra.mxu0 %v1813
  %1912 = vmatprep.subr.bf16.mxu0 0
  %1913 = vmatpush1.bf16.msra.mxu0 %v1812
  %1914 = vmatprep.subr.bf16.mxu0 0
  %1915 = vmatpush1.bf16.msra.mxu0 %v1811
  %1916 = vmatprep.subr.bf16.mxu0 0
  %1917 = vmatpush2.bf16.msra.mxu0 %v1826
  %1918 = vmatprep.subr.bf16.mxu0 0
  %1919 = vmatpush2.bf16.msra.mxu0 %v1825
  %1920 = vmatprep.subr.bf16.mxu0 0
  %1921 = vmatpush2.bf16.msra.mxu0 %v1824
  %1922 = vmatprep.subr.bf16.mxu0 0
  %1923 = vmatpush2.bf16.msra.mxu0 %v1823
  %1924 = vmatprep.subr.bf16.mxu0 0
  %1925 = vmatpush2.bf16.msra.mxu0 %v1822
  %1926 = vmatprep.subr.bf16.mxu0 0
  %1927 = vmatpush2.bf16.msra.mxu0 %v1821
  %1928 = vmatprep.subr.bf16.mxu0 0
  %1929 = vmatpush2.bf16.msra.mxu0 %v1820
  %1930 = vmatprep.subr.bf16.mxu0 0
  %1931 = vmatpush2.bf16.msra.mxu0 %v1819
  %1932 = vmatprep.mubr.bf16.mxu0 %v1596
  %1933 = vmatmul.mubr.bf16.gmra.mxu0 %v1546
  %v1934 = vpop.f32.mrf.mxu0
  %v1935 = vadd.f32 %v1894, %v1934
  %v1936 = vpop.f32.mrf.mxu0
  %v1937 = vpop.f32.mrf.mxu0
  %v1938 = vadd.f32 %v1897, %v1937
  %v1939 = vpop.f32.mrf.mxu0
  %1940 = vdwg.mxu0
  %vm1941 = vcmask 523264
  %1942 = vst.msk [vmem:[%s7] sm:$0xff] %vm1941, %v1935
  %1943 = vst.msk [vmem:[%s7 + $0x8] sm:$0xff] %vm1941, %v1938
  // Predicated region
  $region30: #{block_forward.1} parent=0 // pred_check
    _
  $region31: #{block_forward.1} parent=0 // pred_check_branch
    %1945 = sbr.rel (0) target = $region33
  $region32: #{block_forward.1} parent=0 // pred_region
    _
  $region33: #{block_forward.1} parent=0 // pred_fallthru
    _
  // Predicated region
  $region34: #{block_forward.1} parent=0 // pred_check
    _
  $region35: #{block_forward.1} parent=0 // pred_check_branch
    %1947 = sbr.rel (0) target = $region37
  $region36: #{block_forward.1} parent=0 // pred_region
    _
  $region37: #{block_forward.1} parent=0 // pred_fallthru
    _

</llo_original>
